<compile_context>
chip_gen: v7x
topology: tpu7x:2x2x1
jax: 0.10.0
libtpu: 0.0.40
codegen_flags: <defaults>
</compile_context>

<pallas_src>
import functools

import numpy as np
import jax
import jax.numpy as jnp
from jax.experimental import pallas as pl
from jax.experimental.pallas import tpu as pltpu


# --------------------------------------------------------------------------------------
# Weight / constant-matrix packing (host side, once)
# --------------------------------------------------------------------------------------

def _bilinear_up_matrix(n):
    """(2n, n) matrix U so that y = U @ x is PyTorch F.interpolate(scale=2, bilinear,
    align_corners=False) along one axis."""
    U = np.zeros((2 * n, n), np.float32)
    for i in range(2 * n):
        src = (i + 0.5) * 0.5 - 0.5
        i0 = int(np.floor(src))
        f = src - i0
        lo = min(max(i0, 0), n - 1)
        hi = min(max(i0 + 1, 0), n - 1)
        U[i, lo] += 1.0 - f
        U[i, hi] += f
    return U


def _conv_g(w_slice, cin, cout, wu):
    """Column/channel mixing matrix for one 3x3-conv kernel ROW.

    w_slice: (3, cin, cout) taps (dj, ci, o).  Returns G of shape (wu*cin, wu*cout) with
    G[wi*cin+ci, wo*cout+o] = w[dj, ci, o] where wi = wo + dj - 1 ('same' zero padding folded)."""
    G = np.zeros((wu * cin, wu * cout), np.float32)
    for wo in range(wu):
        for dj in range(3):
            wi = wo + dj - 1
            if 0 <= wi < wu:
                G[wi * cin:(wi + 1) * cin, wo * cout:(wo + 1) * cout] += w_slice[dj]
    return G


def _build_slab(segs, width):
    """Concatenate named 2-D blocks into one (R, width) slab; rows of each segment padded to a
    multiple of 8 so every static slice inside the kernel is sublane-aligned."""
    blocks, meta, off = [], {}, 0
    for name, a in segs:
        a = np.asarray(a, np.float32)
        r, c = a.shape
        pad_r = (-r) % 8
        blocks.append(np.pad(a, ((0, pad_r), (0, width - c))))
        meta[name] = (off, r)
        off += r + pad_r
    return np.concatenate(blocks, axis=0), meta


def pack_operands(params, *, in_channels, out_channels, skip_channels, group, H, W, batch):
    """Repack module parameters into the batch-folded matrices / slabs the fused kernel consumes."""
    B = batch
    Cin, Cout, Cs = in_channels, out_channels, skip_channels
    Cg = Cin // group
    Cb = Cout                      # boundary-guide channels (RFB_C(out_channels))
    Hu, Wu = 2 * H, 2 * W

    p = {k: np.asarray(v, np.float32) for k, v in params.items()}
    bn = np.float32(1.0 / np.sqrt(1.0 + 1e-5))   # eval-mode BN fold (mean=0, var=1, g=1, b=0)
    w2, b2 = p['w2'] * bn, p['b2'] * bn
    w3, b3 = p['w3'] * bn, p['b3'] * bn

    eyeW = np.eye(Wu, dtype=np.float32)
    eyeB = np.eye(B, dtype=np.float32)
    bfold = lambda m: np.kron(eyeB, m)           # batch is the OUTER index of the lane axis

    # bilinear x2 upsample as two matmuls on the (H, B*W*C) lane-flat layout
    uh = _bilinear_up_matrix(H)                                                   # (Hu, H)
    uwk = bfold(np.kron(_bilinear_up_matrix(W).T, np.eye(Cin, dtype=np.float32)))  # (B*W*Cin, B*Wu*Cin)

    # grouped 1x1 attention:  att = sigmoid(xu @ katt + b1);  mean over groups + channel expand
    W1 = np.zeros((Cin, group), np.float32)
    for g in range(group):
        W1[g * Cg:(g + 1) * Cg, g] = p['w1']
    katt = bfold(np.kron(eyeW, W1))                                       # (B*Wu*Cin, B*Wu*group)
    gme = bfold(np.kron(eyeW, np.ones((group, Cin), np.float32) / group))  # (B*Wu*group, B*Wu*Cin)

    # conv2 (x-path + skip-path merged per kernel row) and conv3
    g2 = [np.vstack([bfold(_conv_g(w2[di, :, :Cin, :], Cin, Cout, Wu)),
                     bfold(_conv_g(w2[di, :, Cin:, :], Cs, Cout, Wu))]) for di in range(3)]
    g3 = [bfold(_conv_g(w3[di], Cout, Cout, Wu)) for di in range(3)]
    b2row = np.tile(b2, B * Wu)[None, :]
    b3row = np.tile(b3, B * Wu)[None, :]

    # RFB_C: avg-pool -> branches (no nonlinearity) -> 1x1 -> sigmoid collapses to ONE affine map.
    # (On the 1x1-pooled guide every dilated conv1d reduces exactly to its centre tap.)
    wbig = np.concatenate([p['rc1_w'].T, p['rc2_w'][:, :, 1].T,
                           p['rc3_w'][:, :, 1].T, p['rc4_w'][:, :, 1].T], axis=1)   # (Cb, 4Cb)
    bbig = np.concatenate([p['rc1_b'], p['rc2_b'], p['rc3_b'], p['rc4_b']])          # (4Cb,)
    A1 = wbig @ p['rcf_w'].T                                                         # (Cb, Cb)
    c1 = bbig @ p['rcf_w'].T + p['rcf_b']                                            # (Cb,)
    cmean = np.kron(np.ones((Wu, 1), np.float32) / Wu, np.eye(Cb, dtype=np.float32))
    cA = bfold(cmean @ A1)                                                # (B*Wu*Cb, B*Cb)
    crow = np.tile(c1, B)[None, :]                                        # (1, B*Cb)
    rexp = bfold(np.kron(np.ones((1, Wu), np.float32), np.eye(Cb, dtype=np.float32)))

    # RFB_S: channel-mean selector, channel-broadcast expander, folded scalar tap weights
    msel = bfold(np.kron(eyeW, np.ones((Cb, 1), np.float32) / Cb))        # (B*Wu*Cb, B*Wu)
    sexp = bfold(np.kron(eyeW, np.ones((1, Cout), np.float32)))           # (B*Wu, B*Wu*Cout)
    wf = p['rsf_w']
    a1 = wf[0] * p['rs1_w']
    bft = (p['rsf_b'] + wf[0] * p['rs1_b'] + wf[1] * p['rs2_b']
           + wf[2] * p['rs3_b'] + wf[3] * p['rs4_b'])
    taps = np.stack([wf[1 + k] * p['rs%d_w' % (2 + k)] for k in range(3)])   # (3, 3, 3)

    scal = np.zeros((32,), np.float32)                 # SMEM scalar table
    scal[0], scal[1], scal[2] = p['b1'], a1, bft
    scal[3:30] = taps.reshape(-1)

    # ---- coalesce all constant matrices into two slabs (fewer DMA descriptors at kernel start)
    narrow_segs = [('katt', katt), ('msel', msel), ('cA', cA), ('c', crow)]
    n_width = max(a.shape[1] for _, a in narrow_segs)
    rexp_pad = np.zeros((n_width, rexp.shape[1]), np.float32)
    rexp_pad[:rexp.shape[0]] = rexp        # zero rows kill the sigmoid(0) junk lanes of `chan`

    wide_segs = [('b2', b2row), ('b3', b3row), ('uwk', uwk), ('gme', gme),
                 ('g2_0', g2[0]), ('g2_1', g2[1]), ('g2_2', g2[2]),
                 ('g3_0', g3[0]), ('g3_1', g3[1]), ('g3_2', g3[2]),
                 ('rexp', rexp_pad), ('sexp', sexp)]
    w_width = max(a.shape[1] for _, a in wide_segs)
    for name, a in wide_segs:
        assert a.shape[1] == w_width, (
            f"wide-slab packing needs equal lane widths ({name}: {a.shape[1]} vs {w_width}); "
            "this demo assumes Cin == Cout == skip/boundary channels")

    wide, wmeta = _build_slab(wide_segs, w_width)
    narrow, nmeta = _build_slab(narrow_segs, n_width)

    ops = dict(
        scal=jnp.asarray(scal, jnp.float32),
        uh=jnp.asarray(uh, jnp.bfloat16),
        wide=jnp.asarray(wide, jnp.bfloat16),      # bf16 MXU operands, f32 accumulation
        narrow=jnp.asarray(narrow, jnp.bfloat16),
    )
    meta = dict(B=B, H=H, W=W, Hu=Hu, Wu=Wu, Cin=Cin, Cout=Cout, Cs=Cs, Cb=Cb, group=group,
                wmeta=wmeta, nmeta=nmeta)
    return ops, meta


# --------------------------------------------------------------------------------------
# Fused Pallas kernel
# --------------------------------------------------------------------------------------

def _make_kernel(meta, has_bg):
    f32, bf16 = jnp.float32, jnp.bfloat16
    Hu, Wu, B = meta['Hu'], meta['Wu'], meta['B']
    wmeta, nmeta = meta['wmeta'], meta['nmeta']

    def kernel(*refs):
        if has_bg:
            x_ref, skip_ref, bg_ref, scal_ref, uh_ref, wide_ref, nar_ref, o_ref = refs
        else:
            x_ref, skip_ref, scal_ref, uh_ref, wide_ref, nar_ref, o_ref = refs

        def w(name):                                   # static, sublane-aligned slab slice
            off, r = wmeta[name]
            return wide_ref[off:off + r, :]

        def n(name):
            off, r = nmeta[name]
            return nar_ref[off:off + r, :]

        def dot(a, b):
            return jnp.dot(a, b, preferred_element_type=f32)

        def shift_rows(t, off):
            # out[h] = t[h + off], zero fill ('same' padding): XLU sublane roll + VPU mask.
            if off == 0:
                return t
            nrow = t.shape[0]
            rolled = pltpu.roll(t, shift=(-off) % nrow, axis=0)
            rid = jax.lax.broadcasted_iota(jnp.int32, t.shape, 0)
            mask = rid < (nrow - off) if off > 0 else rid >= (-off)
            return jnp.where(mask, rolled, 0.0)

        def shift_cols(t, off):
            # per-image column shift with zero fill on the (Hu, B*Wu) channel-mean map
            if off == 0:
                return t
            z = jnp.zeros((t.shape[0], abs(off)), t.dtype)
            blocks = []
            for b in range(B):
                blk = t[:, b * Wu:(b + 1) * Wu]
                if off > 0:
                    blocks.append(jnp.concatenate([blk[:, off:], z], axis=1))
                else:
                    blocks.append(jnp.concatenate([z, blk[:, :Wu + off]], axis=1))
            return jnp.concatenate(blocks, axis=1)

        # 1) bilinear x2 upsample:  xu = Uh @ (x @ (Uw^T (x) I))        (Hu, B*Wu*Cin) lane-dense
        xu = dot(uh_ref[...], dot(x_ref[...].astype(bf16), w('uwk')).astype(bf16))

        # 2) grouped 1x1 attention, fused residual:  x_for = x * mean_g(att) + x
        att = jax.nn.sigmoid(dot(xu.astype(bf16), n('katt')) + scal_ref[0])
        xfor = xu * (dot(att.astype(bf16), w('gme')) + 1.0)

        # 3) conv2 (3x3 'same', BN folded) + ReLU: x-path & skip-path merged into one K=256 matmul
        #    per kernel row; the row taps are sublane shifts instead of selector matmuls.
        xs = jnp.concatenate([xfor.astype(bf16), skip_ref[...].astype(bf16)], axis=-1)
        t0, t1, t2 = dot(xs, w('g2_0')), dot(xs, w('g2_1')), dot(xs, w('g2_2'))
        x2 = jnp.maximum(t1 + shift_rows(t0, -1) + shift_rows(t2, 1) + w('b2'), 0.0)

        if has_bg:
            bg = bg_ref[...]                                             # (Hu, B*Wu*Cb) f32

            # 4) RFB_C: collapsed affine + sigmoid on the avg-pooled guide, broadcast back
            gmean = jnp.mean(bg, axis=0, keepdims=True)                  # (1, B*Wu*Cb)
            chan = jax.nn.sigmoid(dot(gmean.astype(bf16), n('cA')) + n('c'))
            x2 = x2 + dot(chan.astype(bf16), w('rexp'))                  # rows broadcast

            # 5) RFB_S: channel-mean map; 1x1 branch + three dilated 3x3 (1->1) branches as 27
            #    scalar-weighted shifted adds on the VPU/XLU (no MXU), then channel broadcast.
            m = dot(bg.astype(bf16), n('msel'))                          # (Hu, B*Wu)
            sacc = scal_ref[1] * m + scal_ref[2]
            for k, d in enumerate((3, 5, 7)):
                cs = [shift_cols(m, (kj - 1) * d) for kj in range(3)]
                for ki in range(3):
                    o = 3 + k * 9 + ki * 3
                    row = scal_ref[o] * cs[0] + scal_ref[o + 1] * cs[1] + scal_ref[o + 2] * cs[2]
                    sacc = sacc + shift_rows(row, (ki - 1) * d)
            x2 = x2 + dot(jax.nn.sigmoid(sacc).astype(bf16), w('sexp'))

        # 6) conv3 (3x3 'same', BN folded) + ReLU
        x2b = x2.astype(bf16)
        u0, u1, u2 = dot(x2b, w('g3_0')), dot(x2b, w('g3_1')), dot(x2b, w('g3_2'))
        o_ref[...] = jnp.maximum(u1 + shift_rows(u0, -1) + shift_rows(u2, 1) + w('b3'),
                                 0.0).astype(o_ref.dtype)

    return kernel


def upsample_block_forward(meta, ops, x, skip_connection, boundary_guide=None):
    """UpsampleBlock.forward — NCHW in/out, one fused Pallas kernel (batch folded into lanes)."""
    B, Cin, H, W = x.shape
    Hu, Wu, Cout = meta['Hu'], meta['Wu'], meta['Cout']
    assert (B, Cin, H, W) == (meta['B'], meta['Cin'], meta['H'], meta['W'])
    has_bg = boundary_guide is not None

    # NCHW -> (H, B*W*C): batch folded into the (outermost) lane index.
    # TODO(synk): in a full model keep this lane-flat layout between layers so these host-side
    # repacks (and the inverse below) disappear from the trace.
    def to_lanes(a):
        b, c, h, w_ = a.shape
        return jnp.transpose(a, (2, 0, 3, 1)).reshape(h, b * w_ * c)

    ins = [to_lanes(x), to_lanes(skip_connection)]
    if has_bg:
        assert boundary_guide.shape[1] == Cout
        ins.append(to_lanes(boundary_guide))
    ins += [ops['scal'], ops['uh'], ops['wide'], ops['narrow']]

    vmem = pl.BlockSpec(memory_space=pltpu.MemorySpace.VMEM)
    smem = pl.BlockSpec(memory_space=pltpu.MemorySpace.SMEM)
    in_specs = [vmem, vmem] + ([vmem] if has_bg else []) + [smem, vmem, vmem, vmem]

    out = pl.pallas_call(
        _make_kernel(meta, has_bg),
        out_shape=jax.ShapeDtypeStruct((Hu, B * Wu * Cout), x.dtype),
        in_specs=in_specs,
        out_specs=vmem,
    )(*ins)
    return jnp.transpose(out.reshape(Hu, B, Wu, Cout), (1, 3, 0, 2))


# --------------------------------------------------------------------------------------
# Parameter setup (deterministic, synthetic)
# --------------------------------------------------------------------------------------

def init_params(key, in_channels, out_channels, skip_channels, group):
    Cg = in_channels // group
    Cin2 = in_channels + skip_channels
    C = out_channels
    ks = iter(jax.random.split(key, 32))

    def rnd(shape, scale=0.1):
        return scale * jax.random.normal(next(ks), shape, jnp.float32)

    return dict(
        # conv1 (group attention): Conv2d(Cg, 1, 1x1) + Sigmoid
        w1=rnd((Cg,)), b1=rnd(()),
        # conv2: Conv2d(Cin+Cskip, C, 3x3, pad=1) + BN + ReLU      (kh, kw, in, out)
        w2=rnd((3, 3, Cin2, C)), b2=rnd((C,)),
        # conv3: Conv2d(C, C, 3x3, pad=1) + BN + ReLU
        w3=rnd((3, 3, C, C)), b3=rnd((C,)),
        # RFB_C branch conv1d weights (out, in[, k]) and biases; final 1x1 (out=C, in=4C)
        rc1_w=rnd((C, C)), rc1_b=rnd((C,)),
        rc2_w=rnd((C, C, 3)), rc2_b=rnd((C,)),
        rc3_w=rnd((C, C, 3)), rc3_b=rnd((C,)),
        rc4_w=rnd((C, C, 3)), rc4_b=rnd((C,)),
        rcf_w=rnd((C, 4 * C)), rcf_b=rnd((C,)),
        # RFB_S: 1x1 branch, three dilated 3x3 (dil 3/5/7) 1->1 branches, final 1x1 (4 -> 1)
        rs1_w=rnd(()), rs1_b=rnd(()),
        rs2_w=rnd((3, 3)), rs2_b=rnd(()),
        rs3_w=rnd((3, 3)), rs3_b=rnd(()),
        rs4_w=rnd((3, 3)), rs4_b=rnd(()),
        rsf_w=rnd((4,)), rsf_b=rnd(()),
    )


# --------------------------------------------------------------------------------------
# Main
# --------------------------------------------------------------------------------------

if __name__ == "__main__":
    key = jax.random.PRNGKey(0)
    k_x, k_skip, k_bg, k_p = jax.random.split(key, 4)

    B = 2
    in_channels = out_channels = skip_channels = 4
    group = 1
    H = W = 8                      # pre-upsample spatial size -> 16x16 after the x2 upsample

    # PyTorch-style NCHW inputs
    x = jax.random.normal(k_x, (B, in_channels, H, W), jnp.float32)
    skip = jax.random.normal(k_skip, (B, skip_channels, 2 * H, 2 * W), jnp.float32)
    bg = jax.random.normal(k_bg, (B, out_channels, 2 * H, 2 * W), jnp.float32)

    params = init_params(k_p, in_channels, out_channels, skip_channels, group)
    ops, meta = pack_operands(params, in_channels=in_channels, out_channels=out_channels,
                              skip_channels=skip_channels, group=group, H=H, W=W, batch=B)

    fwd = jax.jit(functools.partial(upsample_block_forward, meta))
    out = fwd(ops, x, skip, bg)
    jax.block_until_ready(out)

    assert out.shape == (B, out_channels, 2 * H, 2 * W)
    assert bool(jnp.all(jnp.isfinite(out)))
    print("KERNEL_OK")
</pallas_src>

<mosaic_0001>
module attributes {stable_mosaic.version = 11 : i64} {
  func.func @kernel(%arg0: memref<8x64xf32, #tpu.memory_space<vmem>>, %arg1: memref<16x128xf32, #tpu.memory_space<vmem>>, %arg2: memref<16x128xf32, #tpu.memory_space<vmem>>, %arg3: memref<32xf32, #tpu.memory_space<smem>>, %arg4: memref<16x8xbf16, #tpu.memory_space<vmem>>, %arg5: memref<1328x128xbf16, #tpu.memory_space<vmem>>, %arg6: memref<392x32xbf16, #tpu.memory_space<vmem>>, %arg7: memref<16x128xf32, #tpu.memory_space<vmem>>) attributes {dimension_semantics = [], scalar_prefetch = 0 : i64, scratch_operands = 0 : i64, tpu.core_type = #tpu.core_type<tc>} {
    %c0 = arith.constant 0 : index
    %c0_0 = arith.constant 0 : index
    %0 = vector.load %arg4[%c0, %c0_0] : memref<16x8xbf16, #tpu.memory_space<vmem>>, vector<16x8xbf16>
    %c0_1 = arith.constant 0 : index
    %c0_2 = arith.constant 0 : index
    %1 = vector.load %arg0[%c0_1, %c0_2] : memref<8x64xf32, #tpu.memory_space<vmem>>, vector<8x64xf32>
    %2 = arith.truncf %1 : vector<8x64xf32> to vector<8x64xbf16>
    %c16 = arith.constant 16 : index
    %c0_3 = arith.constant 0 : index
    %3 = vector.load %arg5[%c16, %c0_3] : memref<1328x128xbf16, #tpu.memory_space<vmem>>, vector<64x128xbf16>
    %cst = arith.constant dense<0.000000e+00> : vector<8x128xf32>
    %4 = tpu.matmul %2, %3, %cst {dimension_numbers = #tpu.dot_dimension_numbers<[1], [0], [0], [1], [0, 0, 1, 1], [], []>} : vector<8x64xbf16>, vector<64x128xbf16>, vector<8x128xf32> -> vector<8x128xf32>
    %5 = arith.truncf %4 : vector<8x128xf32> to vector<8x128xbf16>
    %cst_4 = arith.constant dense<0.000000e+00> : vector<16x128xf32>
    %6 = tpu.matmul %0, %5, %cst_4 {dimension_numbers = #tpu.dot_dimension_numbers<[1], [0], [0], [1], [0, 0, 1, 1], [], []>} : vector<16x8xbf16>, vector<8x128xbf16>, vector<16x128xf32> -> vector<16x128xf32>
    %7 = arith.truncf %6 : vector<16x128xf32> to vector<16x128xbf16>
    %c0_5 = arith.constant 0 : index
    %c0_6 = arith.constant 0 : index
    %8 = vector.load %arg6[%c0_5, %c0_6] : memref<392x32xbf16, #tpu.memory_space<vmem>>, vector<128x32xbf16>
    %cst_7 = arith.constant dense<0.000000e+00> : vector<16x32xf32>
    %9 = tpu.matmul %7, %8, %cst_7 {dimension_numbers = #tpu.dot_dimension_numbers<[1], [0], [0], [1], [0, 0, 1, 1], [], []>} : vector<16x128xbf16>, vector<128x32xbf16>, vector<16x32xf32> -> vector<16x32xf32>
    %c0_8 = arith.constant 0 : index
    %10 = memref.load %arg3[%c0_8] : memref<32xf32, #tpu.memory_space<smem>>
    %11 = vector.broadcast %10 : f32 to vector<16x32xf32>
    %12 = arith.addf %9, %11 : vector<16x32xf32>
    %13 = arith.negf %12 : vector<16x32xf32>
    %14 = math.exp %13 : vector<16x32xf32>
    %cst_9 = arith.constant 1.000000e+00 : f32
    %15 = vector.broadcast %cst_9 : f32 to vector<16x32xf32>
    %16 = arith.addf %15, %14 : vector<16x32xf32>
    %17 = arith.divf %15, %16 : vector<16x32xf32>
    %18 = arith.truncf %17 : vector<16x32xf32> to vector<16x32xbf16>
    %c80 = arith.constant 80 : index
    %c0_10 = arith.constant 0 : index
    %19 = vector.load %arg5[%c80, %c0_10] : memref<1328x128xbf16, #tpu.memory_space<vmem>>, vector<32x128xbf16>
    %cst_11 = arith.constant dense<0.000000e+00> : vector<16x128xf32>
    %20 = tpu.matmul %18, %19, %cst_11 {dimension_numbers = #tpu.dot_dimension_numbers<[1], [0], [0], [1], [0, 0, 1, 1], [], []>} : vector<16x32xbf16>, vector<32x128xbf16>, vector<16x128xf32> -> vector<16x128xf32>
    %cst_12 = arith.constant 1.000000e+00 : f32
    %21 = vector.broadcast %cst_12 : f32 to vector<16x128xf32>
    %22 = arith.addf %20, %21 : vector<16x128xf32>
    %23 = arith.mulf %6, %22 : vector<16x128xf32>
    %24 = arith.truncf %23 : vector<16x128xf32> to vector<16x128xbf16>
    %c0_13 = arith.constant 0 : index
    %c0_14 = arith.constant 0 : index
    %25 = vector.load %arg1[%c0_13, %c0_14] : memref<16x128xf32, #tpu.memory_space<vmem>>, vector<16x128xf32>
    %26 = arith.truncf %25 : vector<16x128xf32> to vector<16x128xbf16>
    %27 = tpu.concatenate %24, %26 in 1 : vector<16x128xbf16>, vector<16x128xbf16> -> vector<16x256xbf16>
    %c112 = arith.constant 112 : index
    %c0_15 = arith.constant 0 : index
    %28 = vector.load %arg5[%c112, %c0_15] : memref<1328x128xbf16, #tpu.memory_space<vmem>>, vector<256x128xbf16>
    %cst_16 = arith.constant dense<0.000000e+00> : vector<16x128xf32>
    %29 = tpu.matmul %27, %28, %cst_16 {dimension_numbers = #tpu.dot_dimension_numbers<[1], [0], [0], [1], [0, 0, 1, 1], [], []>} : vector<16x256xbf16>, vector<256x128xbf16>, vector<16x128xf32> -> vector<16x128xf32>
    %c368 = arith.constant 368 : index
    %c0_17 = arith.constant 0 : index
    %30 = vector.load %arg5[%c368, %c0_17] : memref<1328x128xbf16, #tpu.memory_space<vmem>>, vector<256x128xbf16>
    %cst_18 = arith.constant dense<0.000000e+00> : vector<16x128xf32>
    %31 = tpu.matmul %27, %30, %cst_18 {dimension_numbers = #tpu.dot_dimension_numbers<[1], [0], [0], [1], [0, 0, 1, 1], [], []>} : vector<16x256xbf16>, vector<256x128xbf16>, vector<16x128xf32> -> vector<16x128xf32>
    %c624 = arith.constant 624 : index
    %c0_19 = arith.constant 0 : index
    %32 = vector.load %arg5[%c624, %c0_19] : memref<1328x128xbf16, #tpu.memory_space<vmem>>, vector<256x128xbf16>
    %cst_20 = arith.constant dense<0.000000e+00> : vector<16x128xf32>
    %33 = tpu.matmul %27, %32, %cst_20 {dimension_numbers = #tpu.dot_dimension_numbers<[1], [0], [0], [1], [0, 0, 1, 1], [], []>} : vector<16x256xbf16>, vector<256x128xbf16>, vector<16x128xf32> -> vector<16x128xf32>
    %c1_i32 = arith.constant 1 : i32
    %34 = tpu.dynamic_rotate %29 by %c1_i32 dim 0 : vector<16x128xf32>, i32 -> vector<16x128xf32>
    %35 = tpu.iota {dimensions = array<i32: 0>} : vector<16x128xi32>
    %c1_i32_21 = arith.constant 1 : i32
    %36 = vector.broadcast %c1_i32_21 : i32 to vector<16x128xi32>
    %37 = arith.cmpi sge, %35, %36 : vector<16x128xi32>
    %cst_22 = arith.constant 0.000000e+00 : f32
    %38 = vector.broadcast %cst_22 : f32 to vector<16x128xf32>
    %39 = arith.select %37, %34, %38 : vector<16x128xi1>, vector<16x128xf32>
    %40 = arith.addf %31, %39 : vector<16x128xf32>
    %c15_i32 = arith.constant 15 : i32
    %41 = tpu.dynamic_rotate %33 by %c15_i32 dim 0 : vector<16x128xf32>, i32 -> vector<16x128xf32>
    %42 = tpu.iota {dimensions = array<i32: 0>} : vector<16x128xi32>
    %c15_i32_23 = arith.constant 15 : i32
    %43 = vector.broadcast %c15_i32_23 : i32 to vector<16x128xi32>
    %44 = arith.cmpi slt, %42, %43 : vector<16x128xi32>
    %cst_24 = arith.constant 0.000000e+00 : f32
    %45 = vector.broadcast %cst_24 : f32 to vector<16x128xf32>
    %46 = arith.select %44, %41, %45 : vector<16x128xi1>, vector<16x128xf32>
    %47 = arith.addf %40, %46 : vector<16x128xf32>
    %c0_25 = arith.constant 0 : index
    %c0_26 = arith.constant 0 : index
    %48 = vector.load %arg5[%c0_25, %c0_26] : memref<1328x128xbf16, #tpu.memory_space<vmem>>, vector<1x128xbf16>
    %49 = arith.extf %48 : vector<1x128xbf16> to vector<1x128xf32>
    %50 = vector.broadcast %49 : vector<1x128xf32> to vector<16x128xf32>
    %51 = arith.addf %47, %50 : vector<16x128xf32>
    %cst_27 = arith.constant 0.000000e+00 : f32
    %52 = vector.broadcast %cst_27 : f32 to vector<16x128xf32>
    %53 = arith.maximumf %51, %52 : vector<16x128xf32>
    %c0_28 = arith.constant 0 : index
    %c0_29 = arith.constant 0 : index
    %54 = vector.load %arg2[%c0_28, %c0_29] : memref<16x128xf32, #tpu.memory_space<vmem>>, vector<16x128xf32>
    %cst_30 = arith.constant dense<0.000000e+00> : vector<128xf32>
    %55 = vector.multi_reduction <add>, %54, %cst_30 [0] : vector<16x128xf32> to vector<128xf32>
    %56 = vector.shape_cast %55 : vector<128xf32> to vector<1x128xf32>
    %cst_31 = arith.constant 1.600000e+01 : f32
    %57 = vector.broadcast %cst_31 : f32 to vector<1x128xf32>
    %58 = arith.divf %56, %57 : vector<1x128xf32>
    %59 = arith.truncf %58 : vector<1x128xf32> to vector<1x128xbf16>
    %c256 = arith.constant 256 : index
    %c0_32 = arith.constant 0 : index
    %60 = vector.load %arg6[%c256, %c0_32] : memref<392x32xbf16, #tpu.memory_space<vmem>>, vector<128x32xbf16>
    %cst_33 = arith.constant dense<0.000000e+00> : vector<1x32xf32>
    %61 = tpu.matmul %59, %60, %cst_33 {dimension_numbers = #tpu.dot_dimension_numbers<[1], [0], [0], [1], [0, 0, 1, 1], [], []>} : vector<1x128xbf16>, vector<128x32xbf16>, vector<1x32xf32> -> vector<1x32xf32>
    %c384 = arith.constant 384 : index
    %c0_34 = arith.constant 0 : index
    %62 = vector.load %arg6[%c384, %c0_34] : memref<392x32xbf16, #tpu.memory_space<vmem>>, vector<1x32xbf16>
    %63 = arith.extf %62 : vector<1x32xbf16> to vector<1x32xf32>
    %64 = arith.addf %61, %63 : vector<1x32xf32>
    %65 = arith.negf %64 : vector<1x32xf32>
    %66 = math.exp %65 : vector<1x32xf32>
    %cst_35 = arith.constant 1.000000e+00 : f32
    %67 = vector.broadcast %cst_35 : f32 to vector<1x32xf32>
    %68 = arith.addf %67, %66 : vector<1x32xf32>
    %69 = arith.divf %67, %68 : vector<1x32xf32>
    %70 = arith.truncf %69 : vector<1x32xf32> to vector<1x32xbf16>
    %c1264 = arith.constant 1264 : index
    %c0_36 = arith.constant 0 : index
    %71 = vector.load %arg5[%c1264, %c0_36] : memref<1328x128xbf16, #tpu.memory_space<vmem>>, vector<32x128xbf16>
    %cst_37 = arith.constant dense<0.000000e+00> : vector<1x128xf32>
    %72 = tpu.matmul %70, %71, %cst_37 {dimension_numbers = #tpu.dot_dimension_numbers<[1], [0], [0], [1], [0, 0, 1, 1], [], []>} : vector<1x32xbf16>, vector<32x128xbf16>, vector<1x128xf32> -> vector<1x128xf32>
    %73 = vector.broadcast %72 : vector<1x128xf32> to vector<16x128xf32>
    %74 = arith.addf %53, %73 : vector<16x128xf32>
    %75 = arith.truncf %54 : vector<16x128xf32> to vector<16x128xbf16>
    %c128 = arith.constant 128 : index
    %c0_38 = arith.constant 0 : index
    %76 = vector.load %arg6[%c128, %c0_38] : memref<392x32xbf16, #tpu.memory_space<vmem>>, vector<128x32xbf16>
    %cst_39 = arith.constant dense<0.000000e+00> : vector<16x32xf32>
    %77 = tpu.matmul %75, %76, %cst_39 {dimension_numbers = #tpu.dot_dimension_numbers<[1], [0], [0], [1], [0, 0, 1, 1], [], []>} : vector<16x128xbf16>, vector<128x32xbf16>, vector<16x32xf32> -> vector<16x32xf32>
    %c1 = arith.constant 1 : index
    %78 = memref.load %arg3[%c1] : memref<32xf32, #tpu.memory_space<smem>>
    %79 = vector.broadcast %78 : f32 to vector<16x32xf32>
    %80 = arith.mulf %79, %77 : vector<16x32xf32>
    %c2 = arith.constant 2 : index
    %81 = memref.load %arg3[%c2] : memref<32xf32, #tpu.memory_space<smem>>
    %82 = vector.broadcast %81 : f32 to vector<16x32xf32>
    %83 = arith.addf %80, %82 : vector<16x32xf32>
    %cst_40 = arith.constant 0.000000e+00 : f32
    %84 = vector.broadcast %cst_40 : f32 to vector<16x3xf32>
    %85 = vector.extract_strided_slice %77 {offsets = [0, 0], sizes = [16, 16], strides = [1, 1]} : vector<16x32xf32> to vector<16x16xf32>
    %86 = vector.extract_strided_slice %85 {offsets = [0, 0], sizes = [16, 13], strides = [1, 1]} : vector<16x16xf32> to vector<16x13xf32>
    %87 = tpu.concatenate %84, %86 in 1 : vector<16x3xf32>, vector<16x13xf32> -> vector<16x16xf32>
    %88 = vector.extract_strided_slice %77 {offsets = [0, 16], sizes = [16, 16], strides = [1, 1]} : vector<16x32xf32> to vector<16x16xf32>
    %89 = vector.extract_strided_slice %88 {offsets = [0, 0], sizes = [16, 13], strides = [1, 1]} : vector<16x16xf32> to vector<16x13xf32>
    %90 = tpu.concatenate %84, %89 in 1 : vector<16x3xf32>, vector<16x13xf32> -> vector<16x16xf32>
    %91 = tpu.concatenate %87, %90 in 1 : vector<16x16xf32>, vector<16x16xf32> -> vector<16x32xf32>
    %cst_41 = arith.constant 0.000000e+00 : f32
    %92 = vector.broadcast %cst_41 : f32 to vector<16x3xf32>
    %93 = vector.extract_strided_slice %77 {offsets = [0, 0], sizes = [16, 16], strides = [1, 1]} : vector<16x32xf32> to vector<16x16xf32>
    %94 = vector.extract_strided_slice %93 {offsets = [0, 3], sizes = [16, 13], strides = [1, 1]} : vector<16x16xf32> to vector<16x13xf32>
    %95 = tpu.concatenate %94, %92 in 1 : vector<16x13xf32>, vector<16x3xf32> -> vector<16x16xf32>
    %96 = vector.extract_strided_slice %77 {offsets = [0, 16], sizes = [16, 16], strides = [1, 1]} : vector<16x32xf32> to vector<16x16xf32>
    %97 = vector.extract_strided_slice %96 {offsets = [0, 3], sizes = [16, 13], strides = [1, 1]} : vector<16x16xf32> to vector<16x13xf32>
    %98 = tpu.concatenate %97, %92 in 1 : vector<16x13xf32>, vector<16x3xf32> -> vector<16x16xf32>
    %99 = tpu.concatenate %95, %98 in 1 : vector<16x16xf32>, vector<16x16xf32> -> vector<16x32xf32>
    %c3 = arith.constant 3 : index
    %100 = memref.load %arg3[%c3] : memref<32xf32, #tpu.memory_space<smem>>
    %101 = vector.broadcast %100 : f32 to vector<16x32xf32>
    %102 = arith.mulf %101, %91 : vector<16x32xf32>
    %c4 = arith.constant 4 : index
    %103 = memref.load %arg3[%c4] : memref<32xf32, #tpu.memory_space<smem>>
    %104 = vector.broadcast %103 : f32 to vector<16x32xf32>
    %105 = arith.mulf %104, %77 : vector<16x32xf32>
    %106 = arith.addf %102, %105 : vector<16x32xf32>
    %c5 = arith.constant 5 : index
    %107 = memref.load %arg3[%c5] : memref<32xf32, #tpu.memory_space<smem>>
    %108 = vector.broadcast %107 : f32 to vector<16x32xf32>
    %109 = arith.mulf %108, %99 : vector<16x32xf32>
    %110 = arith.addf %106, %109 : vector<16x32xf32>
    %c3_i32 = arith.constant 3 : i32
    %111 = tpu.dynamic_rotate %110 by %c3_i32 dim 0 : vector<16x32xf32>, i32 -> vector<16x32xf32>
    %112 = tpu.iota {dimensions = array<i32: 0>} : vector<16x32xi32>
    %c3_i32_42 = arith.constant 3 : i32
    %113 = vector.broadcast %c3_i32_42 : i32 to vector<16x32xi32>
    %114 = arith.cmpi sge, %112, %113 : vector<16x32xi32>
    %cst_43 = arith.constant 0.000000e+00 : f32
    %115 = vector.broadcast %cst_43 : f32 to vector<16x32xf32>
    %116 = arith.select %114, %111, %115 : vector<16x32xi1>, vector<16x32xf32>
    %117 = arith.addf %83, %116 : vector<16x32xf32>
    %c6 = arith.constant 6 : index
    %118 = memref.load %arg3[%c6] : memref<32xf32, #tpu.memory_space<smem>>
    %119 = vector.broadcast %118 : f32 to vector<16x32xf32>
    %120 = arith.mulf %119, %91 : vector<16x32xf32>
    %c7 = arith.constant 7 : index
    %121 = memref.load %arg3[%c7] : memref<32xf32, #tpu.memory_space<smem>>
    %122 = vector.broadcast %121 : f32 to vector<16x32xf32>
    %123 = arith.mulf %122, %77 : vector<16x32xf32>
    %124 = arith.addf %120, %123 : vector<16x32xf32>
    %c8 = arith.constant 8 : index
    %125 = memref.load %arg3[%c8] : memref<32xf32, #tpu.memory_space<smem>>
    %126 = vector.broadcast %125 : f32 to vector<16x32xf32>
    %127 = arith.mulf %126, %99 : vector<16x32xf32>
    %128 = arith.addf %124, %127 : vector<16x32xf32>
    %129 = arith.addf %117, %128 : vector<16x32xf32>
    %c9 = arith.constant 9 : index
    %130 = memref.load %arg3[%c9] : memref<32xf32, #tpu.memory_space<smem>>
    %131 = vector.broadcast %130 : f32 to vector<16x32xf32>
    %132 = arith.mulf %131, %91 : vector<16x32xf32>
    %c10 = arith.constant 10 : index
    %133 = memref.load %arg3[%c10] : memref<32xf32, #tpu.memory_space<smem>>
    %134 = vector.broadcast %133 : f32 to vector<16x32xf32>
    %135 = arith.mulf %134, %77 : vector<16x32xf32>
    %136 = arith.addf %132, %135 : vector<16x32xf32>
    %c11 = arith.constant 11 : index
    %137 = memref.load %arg3[%c11] : memref<32xf32, #tpu.memory_space<smem>>
    %138 = vector.broadcast %137 : f32 to vector<16x32xf32>
    %139 = arith.mulf %138, %99 : vector<16x32xf32>
    %140 = arith.addf %136, %139 : vector<16x32xf32>
    %c13_i32 = arith.constant 13 : i32
    %141 = tpu.dynamic_rotate %140 by %c13_i32 dim 0 : vector<16x32xf32>, i32 -> vector<16x32xf32>
    %142 = tpu.iota {dimensions = array<i32: 0>} : vector<16x32xi32>
    %c13_i32_44 = arith.constant 13 : i32
    %143 = vector.broadcast %c13_i32_44 : i32 to vector<16x32xi32>
    %144 = arith.cmpi slt, %142, %143 : vector<16x32xi32>
    %cst_45 = arith.constant 0.000000e+00 : f32
    %145 = vector.broadcast %cst_45 : f32 to vector<16x32xf32>
    %146 = arith.select %144, %141, %145 : vector<16x32xi1>, vector<16x32xf32>
    %147 = arith.addf %129, %146 : vector<16x32xf32>
    %cst_46 = arith.constant 0.000000e+00 : f32
    %148 = vector.broadcast %cst_46 : f32 to vector<16x5xf32>
    %149 = vector.extract_strided_slice %77 {offsets = [0, 0], sizes = [16, 16], strides = [1, 1]} : vector<16x32xf32> to vector<16x16xf32>
    %150 = vector.extract_strided_slice %149 {offsets = [0, 0], sizes = [16, 11], strides = [1, 1]} : vector<16x16xf32> to vector<16x11xf32>
    %151 = tpu.concatenate %148, %150 in 1 : vector<16x5xf32>, vector<16x11xf32> -> vector<16x16xf32>
    %152 = vector.extract_strided_slice %77 {offsets = [0, 16], sizes = [16, 16], strides = [1, 1]} : vector<16x32xf32> to vector<16x16xf32>
    %153 = vector.extract_strided_slice %152 {offsets = [0, 0], sizes = [16, 11], strides = [1, 1]} : vector<16x16xf32> to vector<16x11xf32>
    %154 = tpu.concatenate %148, %153 in 1 : vector<16x5xf32>, vector<16x11xf32> -> vector<16x16xf32>
    %155 = tpu.concatenate %151, %154 in 1 : vector<16x16xf32>, vector<16x16xf32> -> vector<16x32xf32>
    %cst_47 = arith.constant 0.000000e+00 : f32
    %156 = vector.broadcast %cst_47 : f32 to vector<16x5xf32>
    %157 = vector.extract_strided_slice %77 {offsets = [0, 0], sizes = [16, 16], strides = [1, 1]} : vector<16x32xf32> to vector<16x16xf32>
    %158 = vector.extract_strided_slice %157 {offsets = [0, 5], sizes = [16, 11], strides = [1, 1]} : vector<16x16xf32> to vector<16x11xf32>
    %159 = tpu.concatenate %158, %156 in 1 : vector<16x11xf32>, vector<16x5xf32> -> vector<16x16xf32>
    %160 = vector.extract_strided_slice %77 {offsets = [0, 16], sizes = [16, 16], strides = [1, 1]} : vector<16x32xf32> to vector<16x16xf32>
    %161 = vector.extract_strided_slice %160 {offsets = [0, 5], sizes = [16, 11], strides = [1, 1]} : vector<16x16xf32> to vector<16x11xf32>
    %162 = tpu.concatenate %161, %156 in 1 : vector<16x11xf32>, vector<16x5xf32> -> vector<16x16xf32>
    %163 = tpu.concatenate %159, %162 in 1 : vector<16x16xf32>, vector<16x16xf32> -> vector<16x32xf32>
    %c12 = arith.constant 12 : index
    %164 = memref.load %arg3[%c12] : memref<32xf32, #tpu.memory_space<smem>>
    %165 = vector.broadcast %164 : f32 to vector<16x32xf32>
    %166 = arith.mulf %165, %155 : vector<16x32xf32>
    %c13 = arith.constant 13 : index
    %167 = memref.load %arg3[%c13] : memref<32xf32, #tpu.memory_space<smem>>
    %168 = vector.broadcast %167 : f32 to vector<16x32xf32>
    %169 = arith.mulf %168, %77 : vector<16x32xf32>
    %170 = arith.addf %166, %169 : vector<16x32xf32>
    %c14 = arith.constant 14 : index
    %171 = memref.load %arg3[%c14] : memref<32xf32, #tpu.memory_space<smem>>
    %172 = vector.broadcast %171 : f32 to vector<16x32xf32>
    %173 = arith.mulf %172, %163 : vector<16x32xf32>
    %174 = arith.addf %170, %173 : vector<16x32xf32>
    %c5_i32 = arith.constant 5 : i32
    %175 = tpu.dynamic_rotate %174 by %c5_i32 dim 0 : vector<16x32xf32>, i32 -> vector<16x32xf32>
    %176 = tpu.iota {dimensions = array<i32: 0>} : vector<16x32xi32>
    %c5_i32_48 = arith.constant 5 : i32
    %177 = vector.broadcast %c5_i32_48 : i32 to vector<16x32xi32>
    %178 = arith.cmpi sge, %176, %177 : vector<16x32xi32>
    %cst_49 = arith.constant 0.000000e+00 : f32
    %179 = vector.broadcast %cst_49 : f32 to vector<16x32xf32>
    %180 = arith.select %178, %175, %179 : vector<16x32xi1>, vector<16x32xf32>
    %181 = arith.addf %147, %180 : vector<16x32xf32>
    %c15 = arith.constant 15 : index
    %182 = memref.load %arg3[%c15] : memref<32xf32, #tpu.memory_space<smem>>
    %183 = vector.broadcast %182 : f32 to vector<16x32xf32>
    %184 = arith.mulf %183, %155 : vector<16x32xf32>
    %c16_50 = arith.constant 16 : index
    %185 = memref.load %arg3[%c16_50] : memref<32xf32, #tpu.memory_space<smem>>
    %186 = vector.broadcast %185 : f32 to vector<16x32xf32>
    %187 = arith.mulf %186, %77 : vector<16x32xf32>
    %188 = arith.addf %184, %187 : vector<16x32xf32>
    %c17 = arith.constant 17 : index
    %189 = memref.load %arg3[%c17] : memref<32xf32, #tpu.memory_space<smem>>
    %190 = vector.broadcast %189 : f32 to vector<16x32xf32>
    %191 = arith.mulf %190, %163 : vector<16x32xf32>
    %192 = arith.addf %188, %191 : vector<16x32xf32>
    %193 = arith.addf %181, %192 : vector<16x32xf32>
    %c18 = arith.constant 18 : index
    %194 = memref.load %arg3[%c18] : memref<32xf32, #tpu.memory_space<smem>>
    %195 = vector.broadcast %194 : f32 to vector<16x32xf32>
    %196 = arith.mulf %195, %155 : vector<16x32xf32>
    %c19 = arith.constant 19 : index
    %197 = memref.load %arg3[%c19] : memref<32xf32, #tpu.memory_space<smem>>
    %198 = vector.broadcast %197 : f32 to vector<16x32xf32>
    %199 = arith.mulf %198, %77 : vector<16x32xf32>
    %200 = arith.addf %196, %199 : vector<16x32xf32>
    %c20 = arith.constant 20 : index
    %201 = memref.load %arg3[%c20] : memref<32xf32, #tpu.memory_space<smem>>
    %202 = vector.broadcast %201 : f32 to vector<16x32xf32>
    %203 = arith.mulf %202, %163 : vector<16x32xf32>
    %204 = arith.addf %200, %203 : vector<16x32xf32>
    %c11_i32 = arith.constant 11 : i32
    %205 = tpu.dynamic_rotate %204 by %c11_i32 dim 0 : vector<16x32xf32>, i32 -> vector<16x32xf32>
    %206 = tpu.iota {dimensions = array<i32: 0>} : vector<16x32xi32>
    %c11_i32_51 = arith.constant 11 : i32
    %207 = vector.broadcast %c11_i32_51 : i32 to vector<16x32xi32>
    %208 = arith.cmpi slt, %206, %207 : vector<16x32xi32>
    %cst_52 = arith.constant 0.000000e+00 : f32
    %209 = vector.broadcast %cst_52 : f32 to vector<16x32xf32>
    %210 = arith.select %208, %205, %209 : vector<16x32xi1>, vector<16x32xf32>
    %211 = arith.addf %193, %210 : vector<16x32xf32>
    %cst_53 = arith.constant 0.000000e+00 : f32
    %212 = vector.broadcast %cst_53 : f32 to vector<16x7xf32>
    %213 = vector.extract_strided_slice %77 {offsets = [0, 0], sizes = [16, 16], strides = [1, 1]} : vector<16x32xf32> to vector<16x16xf32>
    %214 = vector.extract_strided_slice %213 {offsets = [0, 0], sizes = [16, 9], strides = [1, 1]} : vector<16x16xf32> to vector<16x9xf32>
    %215 = tpu.concatenate %212, %214 in 1 : vector<16x7xf32>, vector<16x9xf32> -> vector<16x16xf32>
    %216 = vector.extract_strided_slice %77 {offsets = [0, 16], sizes = [16, 16], strides = [1, 1]} : vector<16x32xf32> to vector<16x16xf32>
    %217 = vector.extract_strided_slice %216 {offsets = [0, 0], sizes = [16, 9], strides = [1, 1]} : vector<16x16xf32> to vector<16x9xf32>
    %218 = tpu.concatenate %212, %217 in 1 : vector<16x7xf32>, vector<16x9xf32> -> vector<16x16xf32>
    %219 = tpu.concatenate %215, %218 in 1 : vector<16x16xf32>, vector<16x16xf32> -> vector<16x32xf32>
    %cst_54 = arith.constant 0.000000e+00 : f32
    %220 = vector.broadcast %cst_54 : f32 to vector<16x7xf32>
    %221 = vector.extract_strided_slice %77 {offsets = [0, 0], sizes = [16, 16], strides = [1, 1]} : vector<16x32xf32> to vector<16x16xf32>
    %222 = vector.extract_strided_slice %221 {offsets = [0, 7], sizes = [16, 9], strides = [1, 1]} : vector<16x16xf32> to vector<16x9xf32>
    %223 = tpu.concatenate %222, %220 in 1 : vector<16x9xf32>, vector<16x7xf32> -> vector<16x16xf32>
    %224 = vector.extract_strided_slice %77 {offsets = [0, 16], sizes = [16, 16], strides = [1, 1]} : vector<16x32xf32> to vector<16x16xf32>
    %225 = vector.extract_strided_slice %224 {offsets = [0, 7], sizes = [16, 9], strides = [1, 1]} : vector<16x16xf32> to vector<16x9xf32>
    %226 = tpu.concatenate %225, %220 in 1 : vector<16x9xf32>, vector<16x7xf32> -> vector<16x16xf32>
    %227 = tpu.concatenate %223, %226 in 1 : vector<16x16xf32>, vector<16x16xf32> -> vector<16x32xf32>
    %c21 = arith.constant 21 : index
    %228 = memref.load %arg3[%c21] : memref<32xf32, #tpu.memory_space<smem>>
    %229 = vector.broadcast %228 : f32 to vector<16x32xf32>
    %230 = arith.mulf %229, %219 : vector<16x32xf32>
    %c22 = arith.constant 22 : index
    %231 = memref.load %arg3[%c22] : memref<32xf32, #tpu.memory_space<smem>>
    %232 = vector.broadcast %231 : f32 to vector<16x32xf32>
    %233 = arith.mulf %232, %77 : vector<16x32xf32>
    %234 = arith.addf %230, %233 : vector<16x32xf32>
    %c23 = arith.constant 23 : index
    %235 = memref.load %arg3[%c23] : memref<32xf32, #tpu.memory_space<smem>>
    %236 = vector.broadcast %235 : f32 to vector<16x32xf32>
    %237 = arith.mulf %236, %227 : vector<16x32xf32>
    %238 = arith.addf %234, %237 : vector<16x32xf32>
    %c7_i32 = arith.constant 7 : i32
    %239 = tpu.dynamic_rotate %238 by %c7_i32 dim 0 : vector<16x32xf32>, i32 -> vector<16x32xf32>
    %240 = tpu.iota {dimensions = array<i32: 0>} : vector<16x32xi32>
    %c7_i32_55 = arith.constant 7 : i32
    %241 = vector.broadcast %c7_i32_55 : i32 to vector<16x32xi32>
    %242 = arith.cmpi sge, %240, %241 : vector<16x32xi32>
    %cst_56 = arith.constant 0.000000e+00 : f32
    %243 = vector.broadcast %cst_56 : f32 to vector<16x32xf32>
    %244 = arith.select %242, %239, %243 : vector<16x32xi1>, vector<16x32xf32>
    %245 = arith.addf %211, %244 : vector<16x32xf32>
    %c24 = arith.constant 24 : index
    %246 = memref.load %arg3[%c24] : memref<32xf32, #tpu.memory_space<smem>>
    %247 = vector.broadcast %246 : f32 to vector<16x32xf32>
    %248 = arith.mulf %247, %219 : vector<16x32xf32>
    %c25 = arith.constant 25 : index
    %249 = memref.load %arg3[%c25] : memref<32xf32, #tpu.memory_space<smem>>
    %250 = vector.broadcast %249 : f32 to vector<16x32xf32>
    %251 = arith.mulf %250, %77 : vector<16x32xf32>
    %252 = arith.addf %248, %251 : vector<16x32xf32>
    %c26 = arith.constant 26 : index
    %253 = memref.load %arg3[%c26] : memref<32xf32, #tpu.memory_space<smem>>
    %254 = vector.broadcast %253 : f32 to vector<16x32xf32>
    %255 = arith.mulf %254, %227 : vector<16x32xf32>
    %256 = arith.addf %252, %255 : vector<16x32xf32>
    %257 = arith.addf %245, %256 : vector<16x32xf32>
    %c27 = arith.constant 27 : index
    %258 = memref.load %arg3[%c27] : memref<32xf32, #tpu.memory_space<smem>>
    %259 = vector.broadcast %258 : f32 to vector<16x32xf32>
    %260 = arith.mulf %259, %219 : vector<16x32xf32>
    %c28 = arith.constant 28 : index
    %261 = memref.load %arg3[%c28] : memref<32xf32, #tpu.memory_space<smem>>
    %262 = vector.broadcast %261 : f32 to vector<16x32xf32>
    %263 = arith.mulf %262, %77 : vector<16x32xf32>
    %264 = arith.addf %260, %263 : vector<16x32xf32>
    %c29 = arith.constant 29 : index
    %265 = memref.load %arg3[%c29] : memref<32xf32, #tpu.memory_space<smem>>
    %266 = vector.broadcast %265 : f32 to vector<16x32xf32>
    %267 = arith.mulf %266, %227 : vector<16x32xf32>
    %268 = arith.addf %264, %267 : vector<16x32xf32>
    %c9_i32 = arith.constant 9 : i32
    %269 = tpu.dynamic_rotate %268 by %c9_i32 dim 0 : vector<16x32xf32>, i32 -> vector<16x32xf32>
    %270 = tpu.iota {dimensions = array<i32: 0>} : vector<16x32xi32>
    %c9_i32_57 = arith.constant 9 : i32
    %271 = vector.broadcast %c9_i32_57 : i32 to vector<16x32xi32>
    %272 = arith.cmpi slt, %270, %271 : vector<16x32xi32>
    %cst_58 = arith.constant 0.000000e+00 : f32
    %273 = vector.broadcast %cst_58 : f32 to vector<16x32xf32>
    %274 = arith.select %272, %269, %273 : vector<16x32xi1>, vector<16x32xf32>
    %275 = arith.addf %257, %274 : vector<16x32xf32>
    %276 = arith.negf %275 : vector<16x32xf32>
    %277 = math.exp %276 : vector<16x32xf32>
    %cst_59 = arith.constant 1.000000e+00 : f32
    %278 = vector.broadcast %cst_59 : f32 to vector<16x32xf32>
    %279 = arith.addf %278, %277 : vector<16x32xf32>
    %280 = arith.divf %278, %279 : vector<16x32xf32>
    %281 = arith.truncf %280 : vector<16x32xf32> to vector<16x32xbf16>
    %c1296 = arith.constant 1296 : index
    %c0_60 = arith.constant 0 : index
    %282 = vector.load %arg5[%c1296, %c0_60] : memref<1328x128xbf16, #tpu.memory_space<vmem>>, vector<32x128xbf16>
    %cst_61 = arith.constant dense<0.000000e+00> : vector<16x128xf32>
    %283 = tpu.matmul %281, %282, %cst_61 {dimension_numbers = #tpu.dot_dimension_numbers<[1], [0], [0], [1], [0, 0, 1, 1], [], []>} : vector<16x32xbf16>, vector<32x128xbf16>, vector<16x128xf32> -> vector<16x128xf32>
    %284 = arith.addf %74, %283 : vector<16x128xf32>
    %285 = arith.truncf %284 : vector<16x128xf32> to vector<16x128xbf16>
    %c880 = arith.constant 880 : index
    %c0_62 = arith.constant 0 : index
    %286 = vector.load %arg5[%c880, %c0_62] : memref<1328x128xbf16, #tpu.memory_space<vmem>>, vector<128x128xbf16>
    %cst_63 = arith.constant dense<0.000000e+00> : vector<16x128xf32>
    %287 = tpu.matmul %285, %286, %cst_63 {dimension_numbers = #tpu.dot_dimension_numbers<[1], [0], [0], [1], [0, 0, 1, 1], [], []>} : vector<16x128xbf16>, vector<128x128xbf16>, vector<16x128xf32> -> vector<16x128xf32>
    %c1008 = arith.constant 1008 : index
    %c0_64 = arith.constant 0 : index
    %288 = vector.load %arg5[%c1008, %c0_64] : memref<1328x128xbf16, #tpu.memory_space<vmem>>, vector<128x128xbf16>
    %cst_65 = arith.constant dense<0.000000e+00> : vector<16x128xf32>
    %289 = tpu.matmul %285, %288, %cst_65 {dimension_numbers = #tpu.dot_dimension_numbers<[1], [0], [0], [1], [0, 0, 1, 1], [], []>} : vector<16x128xbf16>, vector<128x128xbf16>, vector<16x128xf32> -> vector<16x128xf32>
    %c1136 = arith.constant 1136 : index
    %c0_66 = arith.constant 0 : index
    %290 = vector.load %arg5[%c1136, %c0_66] : memref<1328x128xbf16, #tpu.memory_space<vmem>>, vector<128x128xbf16>
    %cst_67 = arith.constant dense<0.000000e+00> : vector<16x128xf32>
    %291 = tpu.matmul %285, %290, %cst_67 {dimension_numbers = #tpu.dot_dimension_numbers<[1], [0], [0], [1], [0, 0, 1, 1], [], []>} : vector<16x128xbf16>, vector<128x128xbf16>, vector<16x128xf32> -> vector<16x128xf32>
    %c1_i32_68 = arith.constant 1 : i32
    %292 = tpu.dynamic_rotate %287 by %c1_i32_68 dim 0 : vector<16x128xf32>, i32 -> vector<16x128xf32>
    %293 = tpu.iota {dimensions = array<i32: 0>} : vector<16x128xi32>
    %c1_i32_69 = arith.constant 1 : i32
    %294 = vector.broadcast %c1_i32_69 : i32 to vector<16x128xi32>
    %295 = arith.cmpi sge, %293, %294 : vector<16x128xi32>
    %cst_70 = arith.constant 0.000000e+00 : f32
    %296 = vector.broadcast %cst_70 : f32 to vector<16x128xf32>
    %297 = arith.select %295, %292, %296 : vector<16x128xi1>, vector<16x128xf32>
    %298 = arith.addf %289, %297 : vector<16x128xf32>
    %c15_i32_71 = arith.constant 15 : i32
    %299 = tpu.dynamic_rotate %291 by %c15_i32_71 dim 0 : vector<16x128xf32>, i32 -> vector<16x128xf32>
    %300 = tpu.iota {dimensions = array<i32: 0>} : vector<16x128xi32>
    %c15_i32_72 = arith.constant 15 : i32
    %301 = vector.broadcast %c15_i32_72 : i32 to vector<16x128xi32>
    %302 = arith.cmpi slt, %300, %301 : vector<16x128xi32>
    %cst_73 = arith.constant 0.000000e+00 : f32
    %303 = vector.broadcast %cst_73 : f32 to vector<16x128xf32>
    %304 = arith.select %302, %299, %303 : vector<16x128xi1>, vector<16x128xf32>
    %305 = arith.addf %298, %304 : vector<16x128xf32>
    %c8_74 = arith.constant 8 : index
    %c0_75 = arith.constant 0 : index
    %306 = vector.load %arg5[%c8_74, %c0_75] : memref<1328x128xbf16, #tpu.memory_space<vmem>>, vector<1x128xbf16>
    %307 = arith.extf %306 : vector<1x128xbf16> to vector<1x128xf32>
    %308 = vector.broadcast %307 : vector<1x128xf32> to vector<16x128xf32>
    %309 = arith.addf %305, %308 : vector<16x128xf32>
    %cst_76 = arith.constant 0.000000e+00 : f32
    %310 = vector.broadcast %cst_76 : f32 to vector<16x128xf32>
    %311 = arith.maximumf %309, %310 : vector<16x128xf32>
    %c0_77 = arith.constant 0 : index
    %c0_78 = arith.constant 0 : index
    %312 = vector.load %arg7[%c0_77, %c0_78] : memref<16x128xf32, #tpu.memory_space<vmem>>, vector<16x128xf32>
    tpu.vector_store %arg7[%c0_77, %c0_78], %311 {strides = array<i32>} : memref<16x128xf32, #tpu.memory_space<vmem>>, vector<16x128xf32>,
    return
  }
}

</mosaic_0001>

<llo_original>
// kernel: upsample_block_forward.1
$region0: #{upsample_block_forward.1}
  #allocation0 [shape = 'u32[]', space=smem, size = 0x4, offset = 0x4, fixed_abs, tag = 'smem constant byte address 0x4 - core index']
  #allocation1 [shape = 'u32[144,128]{1,0:T(1,128)}', space=vmem, size = 0x12000, scoped, tag = 'internal scratch']
  %s0 = inlined_call_operand.vmem [shape: f32[8,64], index: 0, kind: input, shape index: {}]
  %s1 = inlined_call_operand.vmem [shape: f32[16,128], index: 1, kind: input, shape index: {}]
  %s2 = inlined_call_operand.vmem [shape: f32[16,128], index: 2, kind: input, shape index: {}]
  %s3 = inlined_call_operand.vmem [shape: f32[32], index: 3, kind: input, shape index: {}]
  %s4 = inlined_call_operand.vmem [shape: bf16[16,8], index: 4, kind: input, shape index: {}]
  %s5 = inlined_call_operand.vmem [shape: bf16[1328,128], index: 5, kind: input, shape index: {}]
  %s6 = inlined_call_operand.vmem [shape: bf16[392,32], index: 6, kind: input, shape index: {}]
  %s7 = inlined_call_operand.vmem [shape: f32[16,128], index: 7, kind: output, shape index: {}]
  %s8 = sld [smem:[#allocation0]]
  $region42: #{upsample_block_forward.1} parent=0
    _
  %s10 = ssub.s32 1, %s8
  %s11 = scalar_select 0, %s10, %s8
  $region1: #{upsample_block_forward.1} parent=0
    #allocation2 [shape = 'u8[512]{0}', space=smem, size = 0x200, scoped, tag = 'input window, operand 3, single buffered']
    #allocation3 [shape = 's32[1]{0}', space=sflag, size = 0x4, scoped, tag = 'scoped memory for upsample_block_forward.1']
    %12 = vsyncpa [#allocation3], 0
    // Predicated region
    $region2: #{upsample_block_forward.1} parent=1 // pred_check
      _
    $region3: #{upsample_block_forward.1} parent=1 // pred_check_branch
      %14 = sbr.rel (0) target = $region5
    $region4: #{upsample_block_forward.1} parent=1 // pred_region
      _
    $region5: #{upsample_block_forward.1} parent=1 // pred_fallthru
      _
    // Predicated region
    $region6: #{upsample_block_forward.1} parent=1 // pred_check
      _
    $region7: #{upsample_block_forward.1} parent=1 // pred_check_branch
      %16 = sbr.rel (0) target = $region9
    $region8: #{upsample_block_forward.1} parent=1 // pred_region
      _
    $region9: #{upsample_block_forward.1} parent=1 // pred_fallthru
      _
    // Predicated region
    $region10: #{upsample_block_forward.1} parent=1 // pred_check
      _
    $region11: #{upsample_block_forward.1} parent=1 // pred_check_branch
      %18 = sbr.rel (0) target = $region13
    $region12: #{upsample_block_forward.1} parent=1 // pred_region
      _
    $region13: #{upsample_block_forward.1} parent=1 // pred_fallthru
      _
    // Predicated region
    $region14: #{upsample_block_forward.1} parent=1 // pred_check
      _
    $region15: #{upsample_block_forward.1} parent=1 // pred_check_branch
      %20 = sbr.rel (0) target = $region17
    $region16: #{upsample_block_forward.1} parent=1 // pred_region
      %s22 = ssub.s32 16, 16
      %23 = vsyncadd [#allocation3], %s22
      %s25 = sshll.u32 %s3, 4
      %s26 = int_to_ptr.vmem [resolvable:$true] %s25
      %28 = dma.vmem_to_smem %s26, 16, [#allocation2], [#allocation3]
    $region17: #{upsample_block_forward.1} parent=1 // pred_fallthru
      _
    // Predicated region
    $region18: #{upsample_block_forward.1} parent=1 // pred_check
      _
    $region19: #{upsample_block_forward.1} parent=1 // pred_check_branch
      %30 = sbr.rel (0) target = $region21
    $region20: #{upsample_block_forward.1} parent=1 // pred_region
      _
    $region21: #{upsample_block_forward.1} parent=1 // pred_fallthru
      _
    // Predicated region
    $region22: #{upsample_block_forward.1} parent=1 // pred_check
      _
    $region23: #{upsample_block_forward.1} parent=1 // pred_check_branch
      %32 = sbr.rel (0) target = $region25
    $region24: #{upsample_block_forward.1} parent=1 // pred_region
      _
    $region25: #{upsample_block_forward.1} parent=1 // pred_fallthru
      _
    // Predicated region
    $region26: #{upsample_block_forward.1} parent=1 // pred_check
      _
    $region27: #{upsample_block_forward.1} parent=1 // pred_check_branch
      %34 = sbr.rel (0) target = $region29
    $region28: #{upsample_block_forward.1} parent=1 // pred_region
      _
    $region29: #{upsample_block_forward.1} parent=1 // pred_fallthru
      _
    // Predicated region
    $region30: #{upsample_block_forward.1} parent=1 // pred_check
      _
    $region31: #{upsample_block_forward.1} parent=1 // pred_check_branch
      %36 = sbr.rel (0) target = $region33
    $region32: #{upsample_block_forward.1} parent=1 // pred_region
      %37 = dma.done [#allocation3], 16
    $region33: #{upsample_block_forward.1} parent=1 // pred_fallthru
      _
    %38 = sfence
    %v40 = vld [vmem:[%s4] sm:$0xf]
    %v41 = vld [vmem:[%s4 + $0x4] sm:$0xf]
    %v42 = vld [vmem:[%s0] sm:$0xff]
    %v43 = vpack.c.bf16 %v42, %v42
    %v44 = vld [vmem:[%s5 + $0x8] sm:$0xf]
    %v45 = vld [vmem:[%s5 + $0xc] sm:$0xf]
    %v46 = vld [vmem:[%s5 + $0x10] sm:$0xf]
    %v47 = vld [vmem:[%s5 + $0x14] sm:$0xf]
    %v48 = vld [vmem:[%s5 + $0x18] sm:$0xf]
    %v49 = vld [vmem:[%s5 + $0x1c] sm:$0xf]
    %v50 = vld [vmem:[%s5 + $0x20] sm:$0xf]
    %v51 = vld [vmem:[%s5 + $0x24] sm:$0xf]
    %v60 = vunpack.c.l.b16 %v44
    %v61 = vunpack.c.l.b16 %v45
    %v62 = vunpack.c.l.b16 %v46
    %v63 = vunpack.c.l.b16 %v47
    %v64 = vunpack.c.l.b16 %v48
    %v65 = vunpack.c.l.b16 %v49
    %v66 = vunpack.c.l.b16 %v50
    %v67 = vunpack.c.l.b16 %v51
    %v68 = vpack.c.b16 %v61, %v60
    %v69 = vpack.c.b16 %v63, %v62
    %v70 = vpack.c.b16 %v65, %v64
    %v71 = vpack.c.b16 %v67, %v66
    %vm76 = vcmask 523264
    %v78 = vsel %vm76, %v43, 0
    %80 = vmatprep.subr.bf16.mxu0 0
    %81 = vmatpush1.bf16.msra.mxu0 %v68
    %82 = vmatprep.subr.bf16.mxu0 0
    %83 = vmatpush1.bf16.msra.mxu0 %v69
    %84 = vmatprep.subr.bf16.mxu0 0
    %85 = vmatpush1.bf16.msra.mxu0 %v70
    %86 = vmatprep.subr.bf16.mxu0 0
    %87 = vmatpush1.bf16.msra.mxu0 %v71
    %88 = vmatprep.subr.bf16.mxu0 0
    %89 = vmatpush1.bf16.msra.mxu0 0
    %90 = vmatprep.subr.bf16.mxu0 0
    %91 = vmatpush1.bf16.msra.mxu0 0
    %92 = vmatprep.subr.bf16.mxu0 0
    %93 = vmatpush1.bf16.msra.mxu0 0
    %94 = vmatprep.subr.bf16.mxu0 0
    %95 = vmatpush1.bf16.msra.mxu0 0
    %96 = vmatprep.subr.bf16.mxu0 0
    %97 = vmatpush1.bf16.msra.mxu0 0
    %98 = vmatprep.subr.bf16.mxu0 0
    %99 = vmatpush1.bf16.msra.mxu0 0
    %100 = vmatprep.subr.bf16.mxu0 0
    %101 = vmatpush1.bf16.msra.mxu0 0
    %102 = vmatprep.subr.bf16.mxu0 0
    %103 = vmatpush1.bf16.msra.mxu0 0
    %104 = vmatprep.subr.bf16.mxu0 0
    %105 = vmatpush1.bf16.msra.mxu0 0
    %106 = vmatprep.subr.bf16.mxu0 0
    %107 = vmatpush1.bf16.msra.mxu0 0
    %108 = vmatprep.subr.bf16.mxu0 0
    %109 = vmatpush1.bf16.msra.mxu0 0
    %110 = vmatprep.subr.bf16.mxu0 0
    %111 = vmatpush1.bf16.msra.mxu0 0
    %112 = vmatprep.mubr.bf16.mxu0 0
    %113 = vmatmul.mubr.bf16.gmra.mrb[0].mxu0 %v78
    %v114 = vpop.f32.mrb[0].mxu0
    %v115 = vadd.f32 0.0, %v114
    %v116 = vpop.f32.mrb[0].mxu0
    %v117 = vpop.f32.mrb[0].mxu0
    %v118 = vpop.f32.mrb[0].mxu0
    %119 = vdwg.mxu0
    %v120 = vpack.c.bf16 %v115, %v115
    %v123 = vunpack.c.l.b16 %v40
    %v124 = vunpack.c.l.b16 %v41
    %v125 = vpack.c.b16 %v124, %v123
    %vm126 = vcmask 64512
    %v128 = vsel %vm126, %v125, 0
    %vm130 = vcmask 1043456
    %v132 = vsel %vm130, %v120, 0
    %134 = vmatprep.subr.bf16.mxu0 0
    %135 = vmatpush1.bf16.msra.mxu0 %v132
    %136 = vmatprep.subr.bf16.mxu0 0
    %137 = vmatpush1.bf16.msra.mxu0 0
    %138 = vmatprep.subr.bf16.mxu0 0
    %139 = vmatpush1.bf16.msra.mxu0 0
    %140 = vmatprep.subr.bf16.mxu0 0
    %141 = vmatpush1.bf16.msra.mxu0 0
    %142 = vmatprep.subr.bf16.mxu0 0
    %143 = vmatpush1.bf16.msra.mxu0 0
    %144 = vmatprep.subr.bf16.mxu0 0
    %145 = vmatpush1.bf16.msra.mxu0 0
    %146 = vmatprep.subr.bf16.mxu0 0
    %147 = vmatpush1.bf16.msra.mxu0 0
    %148 = vmatprep.subr.bf16.mxu0 0
    %149 = vmatpush1.bf16.msra.mxu0 0
    %150 = vmatprep.subr.bf16.mxu0 0
    %151 = vmatpush1.bf16.msra.mxu0 0
    %152 = vmatprep.subr.bf16.mxu0 0
    %153 = vmatpush1.bf16.msra.mxu0 0
    %154 = vmatprep.subr.bf16.mxu0 0
    %155 = vmatpush1.bf16.msra.mxu0 0
    %156 = vmatprep.subr.bf16.mxu0 0
    %157 = vmatpush1.bf16.msra.mxu0 0
    %158 = vmatprep.subr.bf16.mxu0 0
    %159 = vmatpush1.bf16.msra.mxu0 0
    %160 = vmatprep.subr.bf16.mxu0 0
    %161 = vmatpush1.bf16.msra.mxu0 0
    %162 = vmatprep.subr.bf16.mxu0 0
    %163 = vmatpush1.bf16.msra.mxu0 0
    %164 = vmatprep.subr.bf16.mxu0 0
    %165 = vmatpush1.bf16.msra.mxu0 0
    %166 = vmatprep.mubr.bf16.mxu0 0
    %167 = vmatmul.mubr.bf16.gmra.mrb[0].mxu0 %v128
    %v168 = vpop.f32.mrb[0].mxu0
    %v169 = vadd.f32 0.0, %v168
    %v170 = vpop.f32.mrb[0].mxu0
    %v171 = vpop.f32.mrb[0].mxu0
    %v172 = vadd.f32 0.0, %v171
    %v173 = vpop.f32.mrb[0].mxu0
    %174 = vdwg.mxu0
    %v175 = vpack.c.bf16 %v172, %v169
    %v176 = vld [vmem:[%s6] sm:$0xf]
    %v177 = vld [vmem:[%s6 + $0x4] sm:$0xf]
    %v178 = vld [vmem:[%s6 + $0x8] sm:$0xf]
    %v179 = vld [vmem:[%s6 + $0xc] sm:$0xf]
    %v180 = vld [vmem:[%s6 + $0x10] sm:$0xf]
    %v181 = vld [vmem:[%s6 + $0x14] sm:$0xf]
    %v182 = vld [vmem:[%s6 + $0x18] sm:$0xf]
    %v183 = vld [vmem:[%s6 + $0x1c] sm:$0xf]
    %v184 = vld [vmem:[%s6 + $0x20] sm:$0xf]
    %v185 = vld [vmem:[%s6 + $0x24] sm:$0xf]
    %v186 = vld [vmem:[%s6 + $0x28] sm:$0xf]
    %v187 = vld [vmem:[%s6 + $0x2c] sm:$0xf]
    %v188 = vld [vmem:[%s6 + $0x30] sm:$0xf]
    %v189 = vld [vmem:[%s6 + $0x34] sm:$0xf]
    %v190 = vld [vmem:[%s6 + $0x38] sm:$0xf]
    %v191 = vld [vmem:[%s6 + $0x3c] sm:$0xf]
    %s192 = sld [smem:[#allocation2]]
    %v193 = vstv %s192
    %v210 = vunpack.c.l.b16 %v176
    %v211 = vunpack.c.l.b16 %v177
    %v212 = vunpack.c.l.b16 %v178
    %v213 = vunpack.c.l.b16 %v179
    %v214 = vunpack.c.l.b16 %v180
    %v215 = vunpack.c.l.b16 %v181
    %v216 = vunpack.c.l.b16 %v182
    %v217 = vunpack.c.l.b16 %v183
    %v218 = vunpack.c.l.b16 %v184
    %v219 = vunpack.c.l.b16 %v185
    %v220 = vunpack.c.l.b16 %v186
    %v221 = vunpack.c.l.b16 %v187
    %v222 = vunpack.c.l.b16 %v188
    %v223 = vunpack.c.l.b16 %v189
    %v224 = vunpack.c.l.b16 %v190
    %v225 = vunpack.c.l.b16 %v191
    %v226 = vpack.c.b16 %v211, %v210
    %v227 = vpack.c.b16 %v213, %v212
    %v228 = vpack.c.b16 %v215, %v214
    %v229 = vpack.c.b16 %v217, %v216
    %v230 = vpack.c.b16 %v219, %v218
    %v231 = vpack.c.b16 %v221, %v220
    %v232 = vpack.c.b16 %v223, %v222
    %v233 = vpack.c.b16 %v225, %v224
    %242 = vmatprep.subr.bf16.mxu0 0
    %243 = vmatpush1.bf16.msra.mxu0 %v226
    %244 = vmatprep.subr.bf16.mxu0 0
    %245 = vmatpush1.bf16.msra.mxu0 %v227
    %246 = vmatprep.subr.bf16.mxu0 0
    %247 = vmatpush1.bf16.msra.mxu0 %v228
    %248 = vmatprep.subr.bf16.mxu0 0
    %249 = vmatpush1.bf16.msra.mxu0 %v229
    %250 = vmatprep.subr.bf16.mxu0 0
    %251 = vmatpush1.bf16.msra.mxu0 %v230
    %252 = vmatprep.subr.bf16.mxu0 0
    %253 = vmatpush1.bf16.msra.mxu0 %v231
    %254 = vmatprep.subr.bf16.mxu0 0
    %255 = vmatpush1.bf16.msra.mxu0 %v232
    %256 = vmatprep.subr.bf16.mxu0 0
    %257 = vmatpush1.bf16.msra.mxu0 %v233
    %258 = vmatprep.subr.bf16.mxu0 0
    %259 = vmatpush1.bf16.msra.mxu0 0
    %260 = vmatprep.subr.bf16.mxu0 0
    %261 = vmatpush1.bf16.msra.mxu0 0
    %262 = vmatprep.subr.bf16.mxu0 0
    %263 = vmatpush1.bf16.msra.mxu0 0
    %264 = vmatprep.subr.bf16.mxu0 0
    %265 = vmatpush1.bf16.msra.mxu0 0
    %266 = vmatprep.subr.bf16.mxu0 0
    %267 = vmatpush1.bf16.msra.mxu0 0
    %268 = vmatprep.subr.bf16.mxu0 0
    %269 = vmatpush1.bf16.msra.mxu0 0
    %270 = vmatprep.subr.bf16.mxu0 0
    %271 = vmatpush1.bf16.msra.mxu0 0
    %272 = vmatprep.subr.bf16.mxu0 0
    %273 = vmatpush1.bf16.msra.mxu0 0
    %274 = vmatprep.mubr.bf16.mxu0 0
    %275 = vmatmul.mubr.bf16.gmra.mrb[0].mxu0 %v175
    %v276 = vpop.f32.mrb[0].mxu0
    %v277 = vadd.f32 %v193, %v276
    %v278 = vpop.f32.mrb[0].mxu0
    %v279 = vpop.f32.mrb[0].mxu0
    %v280 = vadd.f32 %v193, %v279
    %v281 = vpop.f32.mrb[0].mxu0
    %282 = vdwg.mxu0
    %v283 = vxor.u32 %v277, 2147483648
    %v284 = vxor.u32 %v280, 2147483648
    %v285 = vmul.f32 %v283, 1.442695
    %v286 = vpow.pop %v285
    %v287 = vmul.f32 %v284, 1.442695
    %v288 = vpow.pop %v287
    %v289 = vadd.f32 %v286, 1.0
    %v290 = vadd.f32 %v288, 1.0
    %v291 = vrcp.pop %v289
    %v292 = vmul.f32 1.0, %v291
    %v293 = vrcp.pop %v290
    %v294 = vmul.f32 1.0, %v293
    %v295 = vpack.c.bf16 %v294, %v292
    %v296 = vld [vmem:[%s5 + $0x28] sm:$0xf]
    %v297 = vld [vmem:[%s5 + $0x2c] sm:$0xf]
    %v298 = vld [vmem:[%s5 + $0x30] sm:$0xf]
    %v299 = vld [vmem:[%s5 + $0x34] sm:$0xf]
    %v304 = vunpack.c.l.b16 %v296
    %v305 = vunpack.c.l.b16 %v297
    %v306 = vunpack.c.l.b16 %v298
    %v307 = vunpack.c.l.b16 %v299
    %v308 = vpack.c.b16 %v305, %v304
    %v309 = vpack.c.b16 %v307, %v306
    %vm312 = vcmask 261120
    %v314 = vsel %vm312, %v295, 0
    %316 = vmatprep.subr.bf16.mxu0 0
    %317 = vmatpush1.bf16.msra.mxu0 %v308
    %318 = vmatprep.subr.bf16.mxu0 0
    %319 = vmatpush1.bf16.msra.mxu0 %v309
    %320 = vmatprep.subr.bf16.mxu0 0
    %321 = vmatpush1.bf16.msra.mxu0 0
    %322 = vmatprep.subr.bf16.mxu0 0
    %323 = vmatpush1.bf16.msra.mxu0 0
    %324 = vmatprep.subr.bf16.mxu0 0
    %325 = vmatpush1.bf16.msra.mxu0 0
    %326 = vmatprep.subr.bf16.mxu0 0
    %327 = vmatpush1.bf16.msra.mxu0 0
    %328 = vmatprep.subr.bf16.mxu0 0
    %329 = vmatpush1.bf16.msra.mxu0 0
    %330 = vmatprep.subr.bf16.mxu0 0
    %331 = vmatpush1.bf16.msra.mxu0 0
    %332 = vmatprep.subr.bf16.mxu0 0
    %333 = vmatpush1.bf16.msra.mxu0 0
    %334 = vmatprep.subr.bf16.mxu0 0
    %335 = vmatpush1.bf16.msra.mxu0 0
    %336 = vmatprep.subr.bf16.mxu0 0
    %337 = vmatpush1.bf16.msra.mxu0 0
    %338 = vmatprep.subr.bf16.mxu0 0
    %339 = vmatpush1.bf16.msra.mxu0 0
    %340 = vmatprep.subr.bf16.mxu0 0
    %341 = vmatpush1.bf16.msra.mxu0 0
    %342 = vmatprep.subr.bf16.mxu0 0
    %343 = vmatpush1.bf16.msra.mxu0 0
    %344 = vmatprep.subr.bf16.mxu0 0
    %345 = vmatpush1.bf16.msra.mxu0 0
    %346 = vmatprep.subr.bf16.mxu0 0
    %347 = vmatpush1.bf16.msra.mxu0 0
    %348 = vmatprep.mubr.bf16.mxu0 0
    %349 = vmatmul.mubr.bf16.gmra.mrb[0].mxu0 %v314
    %v350 = vpop.f32.mrb[0].mxu0
    %v351 = vadd.f32 1.0, %v350
    %v352 = vpop.f32.mrb[0].mxu0
    %v353 = vpop.f32.mrb[0].mxu0
    %v354 = vadd.f32 1.0, %v353
    %v355 = vpop.f32.mrb[0].mxu0
    %356 = vdwg.mxu0
    %v357 = vmul.f32 %v169, %v351
    %v358 = vmul.f32 %v172, %v354
    %v359 = vpack.c.bf16 %v358, %v357
    %v360 = vld [vmem:[%s1] sm:$0xff]
    %v361 = vld [vmem:[%s1 + $0x8] sm:$0xff]
    %v362 = vpack.c.bf16 %v361, %v360
    %v363 = vld [vmem:[%s5 + $0x38] sm:$0xf]
    %v364 = vld [vmem:[%s5 + $0x3c] sm:$0xf]
    %v365 = vld [vmem:[%s5 + $0x40] sm:$0xf]
    %v366 = vld [vmem:[%s5 + $0x44] sm:$0xf]
    %v367 = vld [vmem:[%s5 + $0x48] sm:$0xf]
    %v368 = vld [vmem:[%s5 + $0x4c] sm:$0xf]
    %v369 = vld [vmem:[%s5 + $0x50] sm:$0xf]
    %v370 = vld [vmem:[%s5 + $0x54] sm:$0xf]
    %v371 = vld [vmem:[%s5 + $0x58] sm:$0xf]
    %v372 = vld [vmem:[%s5 + $0x5c] sm:$0xf]
    %v373 = vld [vmem:[%s5 + $0x60] sm:$0xf]
    %v374 = vld [vmem:[%s5 + $0x64] sm:$0xf]
    %v375 = vld [vmem:[%s5 + $0x68] sm:$0xf]
    %v376 = vld [vmem:[%s5 + $0x6c] sm:$0xf]
    %v377 = vld [vmem:[%s5 + $0x70] sm:$0xf]
    %v378 = vld [vmem:[%s5 + $0x74] sm:$0xf]
    %v379 = vld [vmem:[%s5 + $0x78] sm:$0xf]
    %v380 = vld [vmem:[%s5 + $0x7c] sm:$0xf]
    %v381 = vld [vmem:[%s5 + $0x80] sm:$0xf]
    %v382 = vld [vmem:[%s5 + $0x84] sm:$0xf]
    %v383 = vld [vmem:[%s5 + $0x88] sm:$0xf]
    %v384 = vld [vmem:[%s5 + $0x8c] sm:$0xf]
    %v385 = vld [vmem:[%s5 + $0x90] sm:$0xf]
    %v386 = vld [vmem:[%s5 + $0x94] sm:$0xf]
    %v387 = vld [vmem:[%s5 + $0x98] sm:$0xf]
    %v388 = vld [vmem:[%s5 + $0x9c] sm:$0xf]
    %v389 = vld [vmem:[%s5 + $0xa0] sm:$0xf]
    %v390 = vld [vmem:[%s5 + $0xa4] sm:$0xf]
    %v391 = vld [vmem:[%s5 + $0xa8] sm:$0xf]
    %v392 = vld [vmem:[%s5 + $0xac] sm:$0xf]
    %v393 = vld [vmem:[%s5 + $0xb0] sm:$0xf]
    %v394 = vld [vmem:[%s5 + $0xb4] sm:$0xf]
    %v427 = vunpack.c.l.b16 %v363
    %v428 = vunpack.c.l.b16 %v364
    %v429 = vunpack.c.l.b16 %v365
    %v430 = vunpack.c.l.b16 %v366
    %v431 = vunpack.c.l.b16 %v367
    %v432 = vunpack.c.l.b16 %v368
    %v433 = vunpack.c.l.b16 %v369
    %v434 = vunpack.c.l.b16 %v370
    %v435 = vunpack.c.l.b16 %v371
    %v436 = vunpack.c.l.b16 %v372
    %v437 = vunpack.c.l.b16 %v373
    %v438 = vunpack.c.l.b16 %v374
    %v439 = vunpack.c.l.b16 %v375
    %v440 = vunpack.c.l.b16 %v376
    %v441 = vunpack.c.l.b16 %v377
    %v442 = vunpack.c.l.b16 %v378
    %v443 = vunpack.c.l.b16 %v379
    %v444 = vunpack.c.l.b16 %v380
    %v445 = vunpack.c.l.b16 %v381
    %v446 = vunpack.c.l.b16 %v382
    %v447 = vunpack.c.l.b16 %v383
    %v448 = vunpack.c.l.b16 %v384
    %v449 = vunpack.c.l.b16 %v385
    %v450 = vunpack.c.l.b16 %v386
    %v451 = vunpack.c.l.b16 %v387
    %v452 = vunpack.c.l.b16 %v388
    %v453 = vunpack.c.l.b16 %v389
    %v454 = vunpack.c.l.b16 %v390
    %v455 = vunpack.c.l.b16 %v391
    %v456 = vunpack.c.l.b16 %v392
    %v457 = vunpack.c.l.b16 %v393
    %v458 = vunpack.c.l.b16 %v394
    %v459 = vpack.c.b16 %v428, %v427
    %v460 = vpack.c.b16 %v430, %v429
    %v461 = vpack.c.b16 %v432, %v431
    %v462 = vpack.c.b16 %v434, %v433
    %v463 = vpack.c.b16 %v436, %v435
    %v464 = vpack.c.b16 %v438, %v437
    %v465 = vpack.c.b16 %v440, %v439
    %v466 = vpack.c.b16 %v442, %v441
    %v467 = vpack.c.b16 %v444, %v443
    %v468 = vpack.c.b16 %v446, %v445
    %v469 = vpack.c.b16 %v448, %v447
    %v470 = vpack.c.b16 %v450, %v449
    %v471 = vpack.c.b16 %v452, %v451
    %v472 = vpack.c.b16 %v454, %v453
    %v473 = vpack.c.b16 %v456, %v455
    %v474 = vpack.c.b16 %v458, %v457
    %491 = vmatprep.subr.bf16.mxu0 0
    %492 = vmatpush1.bf16.msra.mxu0 %v459
    %493 = vmatprep.subr.bf16.mxu0 0
    %494 = vmatpush1.bf16.msra.mxu0 %v460
    %495 = vmatprep.subr.bf16.mxu0 0
    %496 = vmatpush1.bf16.msra.mxu0 %v461
    %497 = vmatprep.subr.bf16.mxu0 0
    %498 = vmatpush1.bf16.msra.mxu0 %v462
    %499 = vmatprep.subr.bf16.mxu0 0
    %500 = vmatpush1.bf16.msra.mxu0 %v463
    %501 = vmatprep.subr.bf16.mxu0 0
    %502 = vmatpush1.bf16.msra.mxu0 %v464
    %503 = vmatprep.subr.bf16.mxu0 0
    %504 = vmatpush1.bf16.msra.mxu0 %v465
    %505 = vmatprep.subr.bf16.mxu0 0
    %506 = vmatpush1.bf16.msra.mxu0 %v466
    %507 = vmatprep.subr.bf16.mxu0 0
    %508 = vmatpush1.bf16.msra.mxu0 %v467
    %509 = vmatprep.subr.bf16.mxu0 0
    %510 = vmatpush1.bf16.msra.mxu0 %v468
    %511 = vmatprep.subr.bf16.mxu0 0
    %512 = vmatpush1.bf16.msra.mxu0 %v469
    %513 = vmatprep.subr.bf16.mxu0 0
    %514 = vmatpush1.bf16.msra.mxu0 %v470
    %515 = vmatprep.subr.bf16.mxu0 0
    %516 = vmatpush1.bf16.msra.mxu0 %v471
    %517 = vmatprep.subr.bf16.mxu0 0
    %518 = vmatpush1.bf16.msra.mxu0 %v472
    %519 = vmatprep.subr.bf16.mxu0 0
    %520 = vmatpush1.bf16.msra.mxu0 %v473
    %521 = vmatprep.subr.bf16.mxu0 0
    %522 = vmatpush1.bf16.msra.mxu0 %v474
    %523 = vmatprep.mubr.bf16.mxu0 %v362
    %524 = vmatmul.mubr.bf16.gmra.mrb[0].mxu0 %v359
    %v525 = vpop.f32.mrb[0].mxu0
    %v526 = vadd.f32 0.0, %v525
    %v527 = vpop.f32.mrb[0].mxu0
    %v528 = vpop.f32.mrb[0].mxu0
    %v529 = vadd.f32 0.0, %v528
    %v530 = vpop.f32.mrb[0].mxu0
    %531 = vdwg.mxu0
    %v532 = vld [vmem:[%s5 + $0xb8] sm:$0xf]
    %v533 = vld [vmem:[%s5 + $0xbc] sm:$0xf]
    %v534 = vld [vmem:[%s5 + $0xc0] sm:$0xf]
    %v535 = vld [vmem:[%s5 + $0xc4] sm:$0xf]
    %v536 = vld [vmem:[%s5 + $0xc8] sm:$0xf]
    %v537 = vld [vmem:[%s5 + $0xcc] sm:$0xf]
    %v538 = vld [vmem:[%s5 + $0xd0] sm:$0xf]
    %v539 = vld [vmem:[%s5 + $0xd4] sm:$0xf]
    %v540 = vld [vmem:[%s5 + $0xd8] sm:$0xf]
    %v541 = vld [vmem:[%s5 + $0xdc] sm:$0xf]
    %v542 = vld [vmem:[%s5 + $0xe0] sm:$0xf]
    %v543 = vld [vmem:[%s5 + $0xe4] sm:$0xf]
    %v544 = vld [vmem:[%s5 + $0xe8] sm:$0xf]
    %v545 = vld [vmem:[%s5 + $0xec] sm:$0xf]
    %v546 = vld [vmem:[%s5 + $0xf0] sm:$0xf]
    %v547 = vld [vmem:[%s5 + $0xf4] sm:$0xf]
    %v548 = vld [vmem:[%s5 + $0xf8] sm:$0xf]
    %v549 = vld [vmem:[%s5 + $0xfc] sm:$0xf]
    %v550 = vld [vmem:[%s5 + $0x100] sm:$0xf]
    %v551 = vld [vmem:[%s5 + $0x104] sm:$0xf]
    %v552 = vld [vmem:[%s5 + $0x108] sm:$0xf]
    %v553 = vld [vmem:[%s5 + $0x10c] sm:$0xf]
    %v554 = vld [vmem:[%s5 + $0x110] sm:$0xf]
    %v555 = vld [vmem:[%s5 + $0x114] sm:$0xf]
    %v556 = vld [vmem:[%s5 + $0x118] sm:$0xf]
    %v557 = vld [vmem:[%s5 + $0x11c] sm:$0xf]
    %v558 = vld [vmem:[%s5 + $0x120] sm:$0xf]
    %v559 = vld [vmem:[%s5 + $0x124] sm:$0xf]
    %v560 = vld [vmem:[%s5 + $0x128] sm:$0xf]
    %v561 = vld [vmem:[%s5 + $0x12c] sm:$0xf]
    %v562 = vld [vmem:[%s5 + $0x130] sm:$0xf]
    %v563 = vld [vmem:[%s5 + $0x134] sm:$0xf]
    %v564 = vld [vmem:[%s5 + $0x138] sm:$0xf]
    %v565 = vld [vmem:[%s5 + $0x13c] sm:$0xf]
    %v566 = vld [vmem:[%s5 + $0x140] sm:$0xf]
    %v567 = vld [vmem:[%s5 + $0x144] sm:$0xf]
    %v568 = vld [vmem:[%s5 + $0x148] sm:$0xf]
    %v569 = vld [vmem:[%s5 + $0x14c] sm:$0xf]
    %v570 = vld [vmem:[%s5 + $0x150] sm:$0xf]
    %v571 = vld [vmem:[%s5 + $0x154] sm:$0xf]
    %v572 = vld [vmem:[%s5 + $0x158] sm:$0xf]
    %v573 = vld [vmem:[%s5 + $0x15c] sm:$0xf]
    %v574 = vld [vmem:[%s5 + $0x160] sm:$0xf]
    %v575 = vld [vmem:[%s5 + $0x164] sm:$0xf]
    %v576 = vld [vmem:[%s5 + $0x168] sm:$0xf]
    %v577 = vld [vmem:[%s5 + $0x16c] sm:$0xf]
    %v578 = vld [vmem:[%s5 + $0x170] sm:$0xf]
    %v579 = vld [vmem:[%s5 + $0x174] sm:$0xf]
    %v580 = vld [vmem:[%s5 + $0x178] sm:$0xf]
    %v581 = vld [vmem:[%s5 + $0x17c] sm:$0xf]
    %v582 = vld [vmem:[%s5 + $0x180] sm:$0xf]
    %v583 = vld [vmem:[%s5 + $0x184] sm:$0xf]
    %v584 = vld [vmem:[%s5 + $0x188] sm:$0xf]
    %v585 = vld [vmem:[%s5 + $0x18c] sm:$0xf]
    %v586 = vld [vmem:[%s5 + $0x190] sm:$0xf]
    %v587 = vld [vmem:[%s5 + $0x194] sm:$0xf]
    %v588 = vld [vmem:[%s5 + $0x198] sm:$0xf]
    %v589 = vld [vmem:[%s5 + $0x19c] sm:$0xf]
    %v590 = vld [vmem:[%s5 + $0x1a0] sm:$0xf]
    %v591 = vld [vmem:[%s5 + $0x1a4] sm:$0xf]
    %v592 = vld [vmem:[%s5 + $0x1a8] sm:$0xf]
    %v593 = vld [vmem:[%s5 + $0x1ac] sm:$0xf]
    %v594 = vld [vmem:[%s5 + $0x1b0] sm:$0xf]
    %v595 = vld [vmem:[%s5 + $0x1b4] sm:$0xf]
    %v628 = vunpack.c.l.b16 %v564
    %v629 = vunpack.c.l.b16 %v565
    %v630 = vunpack.c.l.b16 %v566
    %v631 = vunpack.c.l.b16 %v567
    %v632 = vunpack.c.l.b16 %v568
    %v633 = vunpack.c.l.b16 %v569
    %v634 = vunpack.c.l.b16 %v570
    %v635 = vunpack.c.l.b16 %v571
    %v636 = vunpack.c.l.b16 %v572
    %v637 = vunpack.c.l.b16 %v573
    %v638 = vunpack.c.l.b16 %v574
    %v639 = vunpack.c.l.b16 %v575
    %v640 = vunpack.c.l.b16 %v576
    %v641 = vunpack.c.l.b16 %v577
    %v642 = vunpack.c.l.b16 %v578
    %v643 = vunpack.c.l.b16 %v579
    %v644 = vunpack.c.l.b16 %v580
    %v645 = vunpack.c.l.b16 %v581
    %v646 = vunpack.c.l.b16 %v582
    %v647 = vunpack.c.l.b16 %v583
    %v648 = vunpack.c.l.b16 %v584
    %v649 = vunpack.c.l.b16 %v585
    %v650 = vunpack.c.l.b16 %v586
    %v651 = vunpack.c.l.b16 %v587
    %v652 = vunpack.c.l.b16 %v588
    %v653 = vunpack.c.l.b16 %v589
    %v654 = vunpack.c.l.b16 %v590
    %v655 = vunpack.c.l.b16 %v591
    %v656 = vunpack.c.l.b16 %v592
    %v657 = vunpack.c.l.b16 %v593
    %v658 = vunpack.c.l.b16 %v594
    %v659 = vunpack.c.l.b16 %v595
    %v660 = vpack.c.b16 %v629, %v628
    %v661 = vpack.c.b16 %v631, %v630
    %v662 = vpack.c.b16 %v633, %v632
    %v663 = vpack.c.b16 %v635, %v634
    %v664 = vpack.c.b16 %v637, %v636
    %v665 = vpack.c.b16 %v639, %v638
    %v666 = vpack.c.b16 %v641, %v640
    %v667 = vpack.c.b16 %v643, %v642
    %v668 = vpack.c.b16 %v645, %v644
    %v669 = vpack.c.b16 %v647, %v646
    %v670 = vpack.c.b16 %v649, %v648
    %v671 = vpack.c.b16 %v651, %v650
    %v672 = vpack.c.b16 %v653, %v652
    %v673 = vpack.c.b16 %v655, %v654
    %v674 = vpack.c.b16 %v657, %v656
    %v675 = vpack.c.b16 %v659, %v658
    %692 = vmatprep.subr.bf16.mxu0 0
    %693 = vmatpush1.bf16.msra.mxu0 %v660
    %694 = vmatprep.subr.bf16.mxu0 0
    %695 = vmatpush1.bf16.msra.mxu0 %v661
    %696 = vmatprep.subr.bf16.mxu0 0
    %697 = vmatpush1.bf16.msra.mxu0 %v662
    %698 = vmatprep.subr.bf16.mxu0 0
    %699 = vmatpush1.bf16.msra.mxu0 %v663
    %700 = vmatprep.subr.bf16.mxu0 0
    %701 = vmatpush1.bf16.msra.mxu0 %v664
    %702 = vmatprep.subr.bf16.mxu0 0
    %703 = vmatpush1.bf16.msra.mxu0 %v665
    %704 = vmatprep.subr.bf16.mxu0 0
    %705 = vmatpush1.bf16.msra.mxu0 %v666
    %706 = vmatprep.subr.bf16.mxu0 0
    %707 = vmatpush1.bf16.msra.mxu0 %v667
    %708 = vmatprep.subr.bf16.mxu0 0
    %709 = vmatpush1.bf16.msra.mxu0 %v668
    %710 = vmatprep.subr.bf16.mxu0 0
    %711 = vmatpush1.bf16.msra.mxu0 %v669
    %712 = vmatprep.subr.bf16.mxu0 0
    %713 = vmatpush1.bf16.msra.mxu0 %v670
    %714 = vmatprep.subr.bf16.mxu0 0
    %715 = vmatpush1.bf16.msra.mxu0 %v671
    %716 = vmatprep.subr.bf16.mxu0 0
    %717 = vmatpush1.bf16.msra.mxu0 %v672
    %718 = vmatprep.subr.bf16.mxu0 0
    %719 = vmatpush1.bf16.msra.mxu0 %v673
    %720 = vmatprep.subr.bf16.mxu0 0
    %721 = vmatpush1.bf16.msra.mxu0 %v674
    %722 = vmatprep.subr.bf16.mxu0 0
    %723 = vmatpush1.bf16.msra.mxu0 %v675
    %724 = vmatprep.mubr.bf16.mxu0 %v362
    %725 = vmatmul.mubr.bf16.gmra.mrb[0].mxu0 %v359
    %v726 = vpop.f32.mrb[0].mxu0
    %v727 = vadd.f32 0.0, %v726
    %v728 = vpop.f32.mrb[0].mxu0
    %v729 = vpop.f32.mrb[0].mxu0
    %v730 = vadd.f32 0.0, %v729
    %v731 = vpop.f32.mrb[0].mxu0
    %732 = vdwg.mxu0
    %v733 = vrot.slane %v526, 7
    %v734 = vrot.slane %v529, 7
    %v735 = vlaneseq
    %v736 = vshrl.u32 %v735, 7
    %vm737 = vcmp.lt.s32.totalorder %v736, 1
    %v738 = vsel %vm737, %v733, %v734
    %v739 = vsel %vm737, %v734, %v733
    %v740 = vadd.s32 %v736, 8
    %vm741 = vcmp.ge.s32.totalorder %v736, 1
    %vm742 = vcmp.ge.s32.totalorder %v740, 1
    %v743 = vsel %vm741, %v739, 0.0
    %v744 = vsel %vm742, %v738, 0.0
    %v777 = vunpack.c.l.b16 %v532
    %v778 = vunpack.c.l.b16 %v533
    %v779 = vunpack.c.l.b16 %v534
    %v780 = vunpack.c.l.b16 %v535
    %v781 = vunpack.c.l.b16 %v536
    %v782 = vunpack.c.l.b16 %v537
    %v783 = vunpack.c.l.b16 %v538
    %v784 = vunpack.c.l.b16 %v539
    %v785 = vunpack.c.l.b16 %v540
    %v786 = vunpack.c.l.b16 %v541
    %v787 = vunpack.c.l.b16 %v542
    %v788 = vunpack.c.l.b16 %v543
    %v789 = vunpack.c.l.b16 %v544
    %v790 = vunpack.c.l.b16 %v545
    %v791 = vunpack.c.l.b16 %v546
    %v792 = vunpack.c.l.b16 %v547
    %v793 = vunpack.c.l.b16 %v548
    %v794 = vunpack.c.l.b16 %v549
    %v795 = vunpack.c.l.b16 %v550
    %v796 = vunpack.c.l.b16 %v551
    %v797 = vunpack.c.l.b16 %v552
    %v798 = vunpack.c.l.b16 %v553
    %v799 = vunpack.c.l.b16 %v554
    %v800 = vunpack.c.l.b16 %v555
    %v801 = vunpack.c.l.b16 %v556
    %v802 = vunpack.c.l.b16 %v557
    %v803 = vunpack.c.l.b16 %v558
    %v804 = vunpack.c.l.b16 %v559
    %v805 = vunpack.c.l.b16 %v560
    %v806 = vunpack.c.l.b16 %v561
    %v807 = vunpack.c.l.b16 %v562
    %v808 = vunpack.c.l.b16 %v563
    %v809 = vpack.c.b16 %v778, %v777
    %v810 = vpack.c.b16 %v780, %v779
    %v811 = vpack.c.b16 %v782, %v781
    %v812 = vpack.c.b16 %v784, %v783
    %v813 = vpack.c.b16 %v786, %v785
    %v814 = vpack.c.b16 %v788, %v787
    %v815 = vpack.c.b16 %v790, %v789
    %v816 = vpack.c.b16 %v792, %v791
    %v817 = vpack.c.b16 %v794, %v793
    %v818 = vpack.c.b16 %v796, %v795
    %v819 = vpack.c.b16 %v798, %v797
    %v820 = vpack.c.b16 %v800, %v799
    %v821 = vpack.c.b16 %v802, %v801
    %v822 = vpack.c.b16 %v804, %v803
    %v823 = vpack.c.b16 %v806, %v805
    %v824 = vpack.c.b16 %v808, %v807
    %841 = vmatprep.subr.bf16.mxu0 0
    %842 = vmatpush1.bf16.msra.mxu0 %v809
    %843 = vmatprep.subr.bf16.mxu0 0
    %844 = vmatpush1.bf16.msra.mxu0 %v810
    %845 = vmatprep.subr.bf16.mxu0 0
    %846 = vmatpush1.bf16.msra.mxu0 %v811
    %847 = vmatprep.subr.bf16.mxu0 0
    %848 = vmatpush1.bf16.msra.mxu0 %v812
    %849 = vmatprep.subr.bf16.mxu0 0
    %850 = vmatpush1.bf16.msra.mxu0 %v813
    %851 = vmatprep.subr.bf16.mxu0 0
    %852 = vmatpush1.bf16.msra.mxu0 %v814
    %853 = vmatprep.subr.bf16.mxu0 0
    %854 = vmatpush1.bf16.msra.mxu0 %v815
    %855 = vmatprep.subr.bf16.mxu0 0
    %856 = vmatpush1.bf16.msra.mxu0 %v816
    %857 = vmatprep.subr.bf16.mxu0 0
    %858 = vmatpush1.bf16.msra.mxu0 %v817
    %859 = vmatprep.subr.bf16.mxu0 0
    %860 = vmatpush1.bf16.msra.mxu0 %v818
    %861 = vmatprep.subr.bf16.mxu0 0
    %862 = vmatpush1.bf16.msra.mxu0 %v819
    %863 = vmatprep.subr.bf16.mxu0 0
    %864 = vmatpush1.bf16.msra.mxu0 %v820
    %865 = vmatprep.subr.bf16.mxu0 0
    %866 = vmatpush1.bf16.msra.mxu0 %v821
    %867 = vmatprep.subr.bf16.mxu0 0
    %868 = vmatpush1.bf16.msra.mxu0 %v822
    %869 = vmatprep.subr.bf16.mxu0 0
    %870 = vmatpush1.bf16.msra.mxu0 %v823
    %871 = vmatprep.subr.bf16.mxu0 0
    %872 = vmatpush1.bf16.msra.mxu0 %v824
    %873 = vmatprep.mubr.bf16.mxu0 %v362
    %874 = vmatmul.mubr.bf16.gmra.mrb[0].mxu0 %v359
    %v875 = vpop.f32.mrb[0].mxu0
    %v876 = vadd.f32 %v743, %v875
    %v877 = vpop.f32.mrb[0].mxu0
    %v878 = vpop.f32.mrb[0].mxu0
    %v879 = vadd.f32 %v744, %v878
    %v880 = vpop.f32.mrb[0].mxu0
    %881 = vdwg.mxu0
    %v882 = vrot.slane %v727, 1
    %v883 = vrot.slane %v730, 1
    %vm884 = vcmp.lt.s32.totalorder %v736, 7
    %v885 = vsel %vm884, %v882, %v883
    %v886 = vsel %vm884, %v883, %v882
    %vm887 = vcmp.lt.s32.totalorder %v736, 15
    %vm888 = vcmp.lt.s32.totalorder %v740, 15
    %v889 = vsel %vm887, %v885, 0.0
    %v890 = vsel %vm888, %v886, 0.0
    %v891 = vadd.f32 %v876, %v889
    %v892 = vadd.f32 %v879, %v890
    %v893 = vld [vmem:[%s5] sm:$0x1]
    %v894 = vunpack.c.l.bf16 %v893
    %v895 = vlaneseq
    %v896 = vshrl.u32 %v895, 7
    %v897 = vsub.s32 0, %v896
    %v898 = vrot.slane %v894, %v897
    %v899 = vadd.f32 %v891, %v898
    %v900 = vadd.f32 %v892, %v898
    %v901 = vmax.f32 %v899, 0.0
    %v902 = vmax.f32 %v900, 0.0
    %v903 = vld [vmem:[%s2] sm:$0xff]
    %v904 = vld [vmem:[%s2 + $0x8] sm:$0xff]
    %v905 = vadd.f32 %v903, %v904
    %v906 = vrot.slane %v905, 4
    %v907 = vadd.f32 %v905, %v906
    %v908 = vrot.slane %v907, 2
    %v909 = vadd.f32 %v907, %v908
    %v910 = vrot.slane %v909, 1
    %v911 = vadd.f32 %v909, %v910
    %v912 = vrcp.pop 16.0
    %v913 = vmul.f32 %v911, %v912
    %v914 = vpack.c.bf16 %v913, %v913
    %v915 = vld [vmem:[%s6 + $0x80] sm:$0xf]
    %v916 = vld [vmem:[%s6 + $0x84] sm:$0xf]
    %v917 = vld [vmem:[%s6 + $0x88] sm:$0xf]
    %v918 = vld [vmem:[%s6 + $0x8c] sm:$0xf]
    %v919 = vld [vmem:[%s6 + $0x90] sm:$0xf]
    %v920 = vld [vmem:[%s6 + $0x94] sm:$0xf]
    %v921 = vld [vmem:[%s6 + $0x98] sm:$0xf]
    %v922 = vld [vmem:[%s6 + $0x9c] sm:$0xf]
    %v923 = vld [vmem:[%s6 + $0xa0] sm:$0xf]
    %v924 = vld [vmem:[%s6 + $0xa4] sm:$0xf]
    %v925 = vld [vmem:[%s6 + $0xa8] sm:$0xf]
    %v926 = vld [vmem:[%s6 + $0xac] sm:$0xf]
    %v927 = vld [vmem:[%s6 + $0xb0] sm:$0xf]
    %v928 = vld [vmem:[%s6 + $0xb4] sm:$0xf]
    %v929 = vld [vmem:[%s6 + $0xb8] sm:$0xf]
    %v930 = vld [vmem:[%s6 + $0xbc] sm:$0xf]
    %v931 = vld [vmem:[%s6 + $0xc0] sm:$0x1]
    %v932 = vunpack.c.l.bf16 %v931
    %v949 = vunpack.c.l.b16 %v915
    %v950 = vunpack.c.l.b16 %v916
    %v951 = vunpack.c.l.b16 %v917
    %v952 = vunpack.c.l.b16 %v918
    %v953 = vunpack.c.l.b16 %v919
    %v954 = vunpack.c.l.b16 %v920
    %v955 = vunpack.c.l.b16 %v921
    %v956 = vunpack.c.l.b16 %v922
    %v957 = vunpack.c.l.b16 %v923
    %v958 = vunpack.c.l.b16 %v924
    %v959 = vunpack.c.l.b16 %v925
    %v960 = vunpack.c.l.b16 %v926
    %v961 = vunpack.c.l.b16 %v927
    %v962 = vunpack.c.l.b16 %v928
    %v963 = vunpack.c.l.b16 %v929
    %v964 = vunpack.c.l.b16 %v930
    %v965 = vpack.c.b16 %v950, %v949
    %v966 = vpack.c.b16 %v952, %v951
    %v967 = vpack.c.b16 %v954, %v953
    %v968 = vpack.c.b16 %v956, %v955
    %v969 = vpack.c.b16 %v958, %v957
    %v970 = vpack.c.b16 %v960, %v959
    %v971 = vpack.c.b16 %v962, %v961
    %v972 = vpack.c.b16 %v964, %v963
    %981 = vmatprep.subr.bf16.mxu0 0
    %982 = vmatpush1.bf16.msra.mxu0 %v965
    %983 = vmatprep.subr.bf16.mxu0 0
    %984 = vmatpush1.bf16.msra.mxu0 %v966
    %985 = vmatprep.subr.bf16.mxu0 0
    %986 = vmatpush1.bf16.msra.mxu0 %v967
    %987 = vmatprep.subr.bf16.mxu0 0
    %988 = vmatpush1.bf16.msra.mxu0 %v968
    %989 = vmatprep.subr.bf16.mxu0 0
    %990 = vmatpush1.bf16.msra.mxu0 %v969
    %991 = vmatprep.subr.bf16.mxu0 0
    %992 = vmatpush1.bf16.msra.mxu0 %v970
    %993 = vmatprep.subr.bf16.mxu0 0
    %994 = vmatpush1.bf16.msra.mxu0 %v971
    %995 = vmatprep.subr.bf16.mxu0 0
    %996 = vmatpush1.bf16.msra.mxu0 %v972
    %997 = vmatprep.subr.bf16.mxu0 0
    %998 = vmatpush1.bf16.msra.mxu0 0
    %999 = vmatprep.subr.bf16.mxu0 0
    %1000 = vmatpush1.bf16.msra.mxu0 0
    %1001 = vmatprep.subr.bf16.mxu0 0
    %1002 = vmatpush1.bf16.msra.mxu0 0
    %1003 = vmatprep.subr.bf16.mxu0 0
    %1004 = vmatpush1.bf16.msra.mxu0 0
    %1005 = vmatprep.subr.bf16.mxu0 0
    %1006 = vmatpush1.bf16.msra.mxu0 0
    %1007 = vmatprep.subr.bf16.mxu0 0
    %1008 = vmatpush1.bf16.msra.mxu0 0
    %1009 = vmatprep.subr.bf16.mxu0 0
    %1010 = vmatpush1.bf16.msra.mxu0 0
    %1011 = vmatprep.subr.bf16.mxu0 0
    %1012 = vmatpush1.bf16.msra.mxu0 0
    %1013 = vmatprep.mubr.bf16.mxu0 0
    %1014 = vmatmul.mubr.bf16.gmra.mrb[0].mxu0 %v914
    %v1015 = vpop.f32.mrb[0].mxu0
    %v1016 = vadd.f32 %v932, %v1015
    %v1017 = vpop.f32.mrb[0].mxu0
    %v1018 = vpop.f32.mrb[0].mxu0
    %v1019 = vpop.f32.mrb[0].mxu0
    %1020 = vdwg.mxu0
    %v1021 = vxor.u32 %v1016, 2147483648
    %v1022 = vmul.f32 %v1021, 1.442695
    %v1023 = vpow.pop %v1022
    %v1024 = vadd.f32 %v1023, 1.0
    %v1025 = vrcp.pop %v1024
    %v1026 = vmul.f32 1.0, %v1025
    %v1027 = vpack.c.bf16 %v1026, %v1026
    %v1028 = vld [vmem:[%s5 + $0x278] sm:$0xf]
    %v1029 = vld [vmem:[%s5 + $0x27c] sm:$0xf]
    %v1030 = vld [vmem:[%s5 + $0x280] sm:$0xf]
    %v1031 = vld [vmem:[%s5 + $0x284] sm:$0xf]
    %v1036 = vunpack.c.l.b16 %v1028
    %v1037 = vunpack.c.l.b16 %v1029
    %v1038 = vunpack.c.l.b16 %v1030
    %v1039 = vunpack.c.l.b16 %v1031
    %v1040 = vpack.c.b16 %v1037, %v1036
    %v1041 = vpack.c.b16 %v1039, %v1038
    %v1045 = vsel %vm312, %v1027, 0
    %1047 = vmatprep.subr.bf16.mxu0 0
    %1048 = vmatpush1.bf16.msra.mxu0 %v1040
    %1049 = vmatprep.subr.bf16.mxu0 0
    %1050 = vmatpush1.bf16.msra.mxu0 %v1041
    %1051 = vmatprep.subr.bf16.mxu0 0
    %1052 = vmatpush1.bf16.msra.mxu0 0
    %1053 = vmatprep.subr.bf16.mxu0 0
    %1054 = vmatpush1.bf16.msra.mxu0 0
    %1055 = vmatprep.subr.bf16.mxu0 0
    %1056 = vmatpush1.bf16.msra.mxu0 0
    %1057 = vmatprep.subr.bf16.mxu0 0
    %1058 = vmatpush1.bf16.msra.mxu0 0
    %1059 = vmatprep.subr.bf16.mxu0 0
    %1060 = vmatpush1.bf16.msra.mxu0 0
    %1061 = vmatprep.subr.bf16.mxu0 0
    %1062 = vmatpush1.bf16.msra.mxu0 0
    %1063 = vmatprep.subr.bf16.mxu0 0
    %1064 = vmatpush1.bf16.msra.mxu0 0
    %1065 = vmatprep.subr.bf16.mxu0 0
    %1066 = vmatpush1.bf16.msra.mxu0 0
    %1067 = vmatprep.subr.bf16.mxu0 0
    %1068 = vmatpush1.bf16.msra.mxu0 0
    %1069 = vmatprep.subr.bf16.mxu0 0
    %1070 = vmatpush1.bf16.msra.mxu0 0
    %1071 = vmatprep.subr.bf16.mxu0 0
    %1072 = vmatpush1.bf16.msra.mxu0 0
    %1073 = vmatprep.subr.bf16.mxu0 0
    %1074 = vmatpush1.bf16.msra.mxu0 0
    %1075 = vmatprep.subr.bf16.mxu0 0
    %1076 = vmatpush1.bf16.msra.mxu0 0
    %1077 = vmatprep.subr.bf16.mxu0 0
    %1078 = vmatpush1.bf16.msra.mxu0 0
    %1079 = vmatprep.mubr.bf16.mxu0 0
    %1080 = vmatmul.mubr.bf16.gmra.mrb[0].mxu0 %v1045
    %v1081 = vpop.f32.mrb[0].mxu0
    %v1082 = vadd.f32 0.0, %v1081
    %v1083 = vpop.f32.mrb[0].mxu0
    %v1084 = vpop.f32.mrb[0].mxu0
    %v1085 = vpop.f32.mrb[0].mxu0
    %1086 = vdwg.mxu0
    %v1087 = vlaneseq
    %v1088 = vshrl.u32 %v1087, 7
    %v1089 = vsub.s32 0, %v1088
    %v1090 = vrot.slane %v1082, %v1089
    %v1091 = vadd.f32 %v901, %v1090
    %v1092 = vadd.f32 %v902, %v1090
    %v1093 = vpack.c.bf16 %v904, %v903
    %v1094 = vld [vmem:[%s6 + $0x40] sm:$0xf]
    %v1095 = vld [vmem:[%s6 + $0x44] sm:$0xf]
    %v1096 = vld [vmem:[%s6 + $0x48] sm:$0xf]
    %v1097 = vld [vmem:[%s6 + $0x4c] sm:$0xf]
    %v1098 = vld [vmem:[%s6 + $0x50] sm:$0xf]
    %v1099 = vld [vmem:[%s6 + $0x54] sm:$0xf]
    %v1100 = vld [vmem:[%s6 + $0x58] sm:$0xf]
    %v1101 = vld [vmem:[%s6 + $0x5c] sm:$0xf]
    %v1102 = vld [vmem:[%s6 + $0x60] sm:$0xf]
    %v1103 = vld [vmem:[%s6 + $0x64] sm:$0xf]
    %v1104 = vld [vmem:[%s6 + $0x68] sm:$0xf]
    %v1105 = vld [vmem:[%s6 + $0x6c] sm:$0xf]
    %v1106 = vld [vmem:[%s6 + $0x70] sm:$0xf]
    %v1107 = vld [vmem:[%s6 + $0x74] sm:$0xf]
    %v1108 = vld [vmem:[%s6 + $0x78] sm:$0xf]
    %v1109 = vld [vmem:[%s6 + $0x7c] sm:$0xf]
    %v1126 = vunpack.c.l.b16 %v1094
    %v1127 = vunpack.c.l.b16 %v1095
    %v1128 = vunpack.c.l.b16 %v1096
    %v1129 = vunpack.c.l.b16 %v1097
    %v1130 = vunpack.c.l.b16 %v1098
    %v1131 = vunpack.c.l.b16 %v1099
    %v1132 = vunpack.c.l.b16 %v1100
    %v1133 = vunpack.c.l.b16 %v1101
    %v1134 = vunpack.c.l.b16 %v1102
    %v1135 = vunpack.c.l.b16 %v1103
    %v1136 = vunpack.c.l.b16 %v1104
    %v1137 = vunpack.c.l.b16 %v1105
    %v1138 = vunpack.c.l.b16 %v1106
    %v1139 = vunpack.c.l.b16 %v1107
    %v1140 = vunpack.c.l.b16 %v1108
    %v1141 = vunpack.c.l.b16 %v1109
    %v1142 = vpack.c.b16 %v1127, %v1126
    %v1143 = vpack.c.b16 %v1129, %v1128
    %v1144 = vpack.c.b16 %v1131, %v1130
    %v1145 = vpack.c.b16 %v1133, %v1132
    %v1146 = vpack.c.b16 %v1135, %v1134
    %v1147 = vpack.c.b16 %v1137, %v1136
    %v1148 = vpack.c.b16 %v1139, %v1138
    %v1149 = vpack.c.b16 %v1141, %v1140
    %1158 = vmatprep.subr.bf16.mxu0 0
    %1159 = vmatpush1.bf16.msra.mxu0 %v1142
    %1160 = vmatprep.subr.bf16.mxu0 0
    %1161 = vmatpush1.bf16.msra.mxu0 %v1143
    %1162 = vmatprep.subr.bf16.mxu0 0
    %1163 = vmatpush1.bf16.msra.mxu0 %v1144
    %1164 = vmatprep.subr.bf16.mxu0 0
    %1165 = vmatpush1.bf16.msra.mxu0 %v1145
    %1166 = vmatprep.subr.bf16.mxu0 0
    %1167 = vmatpush1.bf16.msra.mxu0 %v1146
    %1168 = vmatprep.subr.bf16.mxu0 0
    %1169 = vmatpush1.bf16.msra.mxu0 %v1147
    %1170 = vmatprep.subr.bf16.mxu0 0
    %1171 = vmatpush1.bf16.msra.mxu0 %v1148
    %1172 = vmatprep.subr.bf16.mxu0 0
    %1173 = vmatpush1.bf16.msra.mxu0 %v1149
    %1174 = vmatprep.subr.bf16.mxu0 0
    %1175 = vmatpush1.bf16.msra.mxu0 0
    %1176 = vmatprep.subr.bf16.mxu0 0
    %1177 = vmatpush1.bf16.msra.mxu0 0
    %1178 = vmatprep.subr.bf16.mxu0 0
    %1179 = vmatpush1.bf16.msra.mxu0 0
    %1180 = vmatprep.subr.bf16.mxu0 0
    %1181 = vmatpush1.bf16.msra.mxu0 0
    %1182 = vmatprep.subr.bf16.mxu0 0
    %1183 = vmatpush1.bf16.msra.mxu0 0
    %1184 = vmatprep.subr.bf16.mxu0 0
    %1185 = vmatpush1.bf16.msra.mxu0 0
    %1186 = vmatprep.subr.bf16.mxu0 0
    %1187 = vmatpush1.bf16.msra.mxu0 0
    %1188 = vmatprep.subr.bf16.mxu0 0
    %1189 = vmatpush1.bf16.msra.mxu0 0
    %1190 = vmatprep.mubr.bf16.mxu0 0
    %1191 = vmatmul.mubr.bf16.gmra.mrb[0].mxu0 %v1093
    %v1192 = vpop.f32.mrb[0].mxu0
    %v1193 = vadd.f32 0.0, %v1192
    %v1194 = vpop.f32.mrb[0].mxu0
    %v1195 = vpop.f32.mrb[0].mxu0
    %v1196 = vadd.f32 0.0, %v1195
    %v1197 = vpop.f32.mrb[0].mxu0
    %1198 = vdwg.mxu0
    %s1199 = sld [smem:[#allocation2 + $0x1]]
    %v1200 = vstv %s1199
    %v1201 = vmul.f32 %v1200, %v1193
    %v1202 = vmul.f32 %v1200, %v1196
    %s1203 = sld [smem:[#allocation2 + $0x2]]
    %v1204 = vstv %s1203
    %v1205 = vadd.f32 %v1201, %v1204
    %v1206 = vadd.f32 %v1202, %v1204
    %1209 = vrot.lane.b32.xlu0 %v1193, 3
    %v1210 = vpop.permute.xlu0 %1209
    %1211 = vrot.lane.b32.xlu0 %v1196, 3
    %v1212 = vpop.permute.xlu0 %1211
    %vm1215 = vcmask 23552
    %v1216 = vsel %vm1215, 0.0, %v1210
    %v1217 = vsel %vm1215, 0.0, %v1212
    %1218 = vrot.lane.b32.xlu0 %v1193, 115
    %v1219 = vpop.permute.xlu0 %1218
    %1220 = vrot.lane.b32.xlu0 %v1196, 115
    %v1221 = vpop.permute.xlu0 %1220
    %v1224 = vsel %vm1215, 0.0, %v1219
    %v1225 = vsel %vm1215, 0.0, %v1221
    %1228 = vrot.lane.b32.xlu0 %v1224, 16
    %v1229 = vpop.permute.xlu0 %1228
    %1230 = vrot.lane.b32.xlu0 %v1225, 16
    %v1231 = vpop.permute.xlu0 %1230
    %vm1234 = vcmask 130048
    %v1235 = vsel %vm1234, %v1216, %v1229
    %v1236 = vsel %vm1234, %v1217, %v1231
    %1237 = vrot.lane.b32.xlu0 %v1193, 125
    %v1238 = vpop.permute.xlu0 %1237
    %1239 = vrot.lane.b32.xlu0 %v1196, 125
    %v1240 = vpop.permute.xlu0 %1239
    %vm1243 = vcmask 105472
    %v1244 = vsel %vm1243, %v1238, 0.0
    %v1245 = vsel %vm1243, %v1240, 0.0
    %1246 = vrot.lane.b32.xlu0 %v1193, 109
    %v1247 = vpop.permute.xlu0 %1246
    %1248 = vrot.lane.b32.xlu0 %v1196, 109
    %v1249 = vpop.permute.xlu0 %1248
    %v1252 = vsel %vm1243, %v1247, 0.0
    %v1253 = vsel %vm1243, %v1249, 0.0
    %1256 = vrot.lane.b32.xlu0 %v1252, 16
    %v1257 = vpop.permute.xlu0 %1256
    %1258 = vrot.lane.b32.xlu0 %v1253, 16
    %v1259 = vpop.permute.xlu0 %1258
    %v1262 = vsel %vm1234, %v1244, %v1257
    %v1263 = vsel %vm1234, %v1245, %v1259
    %s1264 = sld [smem:[#allocation2 + $0x3]]
    %v1265 = vstv %s1264
    %v1266 = vmul.f32 %v1265, %v1235
    %v1267 = vmul.f32 %v1265, %v1236
    %s1268 = sld [smem:[#allocation2 + $0x4]]
    %v1269 = vstv %s1268
    %v1270 = vmul.f32 %v1269, %v1193
    %v1271 = vmul.f32 %v1269, %v1196
    %v1272 = vadd.f32 %v1266, %v1270
    %v1273 = vadd.f32 %v1267, %v1271
    %s1274 = sld [smem:[#allocation2 + $0x5]]
    %v1275 = vstv %s1274
    %v1276 = vmul.f32 %v1275, %v1262
    %v1277 = vmul.f32 %v1275, %v1263
    %v1278 = vadd.f32 %v1272, %v1276
    %v1279 = vadd.f32 %v1273, %v1277
    %v1280 = vrot.slane %v1278, 5
    %v1281 = vrot.slane %v1279, 5
    %vm1282 = vcmp.lt.s32.totalorder %v736, 3
    %v1283 = vsel %vm1282, %v1280, %v1281
    %v1284 = vsel %vm1282, %v1281, %v1280
    %vm1285 = vcmp.ge.s32.totalorder %v736, 3
    %vm1286 = vcmp.ge.s32.totalorder %v740, 3
    %v1287 = vsel %vm1285, %v1284, 0.0
    %v1288 = vsel %vm1286, %v1283, 0.0
    %v1289 = vadd.f32 %v1205, %v1287
    %v1290 = vadd.f32 %v1206, %v1288
    %s1291 = sld [smem:[#allocation2 + $0x6]]
    %v1292 = vstv %s1291
    %v1293 = vmul.f32 %v1292, %v1235
    %v1294 = vmul.f32 %v1292, %v1236
    %s1295 = sld [smem:[#allocation2 + $0x7]]
    %v1296 = vstv %s1295
    %v1297 = vmul.f32 %v1296, %v1193
    %v1298 = vmul.f32 %v1296, %v1196
    %v1299 = vadd.f32 %v1293, %v1297
    %v1300 = vadd.f32 %v1294, %v1298
    %s1301 = sld [smem:[#allocation2 + $0x8]]
    %v1302 = vstv %s1301
    %v1303 = vmul.f32 %v1302, %v1262
    %v1304 = vmul.f32 %v1302, %v1263
    %v1305 = vadd.f32 %v1299, %v1303
    %v1306 = vadd.f32 %v1300, %v1304
    %v1307 = vadd.f32 %v1289, %v1305
    %v1308 = vadd.f32 %v1290, %v1306
    %s1309 = sld [smem:[#allocation2 + $0x9]]
    %v1310 = vstv %s1309
    %v1311 = vmul.f32 %v1310, %v1235
    %v1312 = vmul.f32 %v1310, %v1236
    %s1313 = sld [smem:[#allocation2 + $0xa]]
    %v1314 = vstv %s1313
    %v1315 = vmul.f32 %v1314, %v1193
    %v1316 = vmul.f32 %v1314, %v1196
    %v1317 = vadd.f32 %v1311, %v1315
    %v1318 = vadd.f32 %v1312, %v1316
    %s1319 = sld [smem:[#allocation2 + $0xb]]
    %v1320 = vstv %s1319
    %v1321 = vmul.f32 %v1320, %v1262
    %v1322 = vmul.f32 %v1320, %v1263
    %v1323 = vadd.f32 %v1317, %v1321
    %v1324 = vadd.f32 %v1318, %v1322
    %v1325 = vrot.slane %v1323, 3
    %v1326 = vrot.slane %v1324, 3
    %vm1327 = vcmp.lt.s32.totalorder %v736, 5
    %v1328 = vsel %vm1327, %v1325, %v1326
    %v1329 = vsel %vm1327, %v1326, %v1325
    %vm1330 = vcmp.lt.s32.totalorder %v736, 13
    %vm1331 = vcmp.lt.s32.totalorder %v740, 13
    %v1332 = vsel %vm1330, %v1328, 0.0
    %v1333 = vsel %vm1331, %v1329, 0.0
    %v1334 = vadd.f32 %v1307, %v1332
    %v1335 = vadd.f32 %v1308, %v1333
    %1336 = vrot.lane.b32.xlu0 %v1193, 5
    %v1337 = vpop.permute.xlu0 %1336
    %1338 = vrot.lane.b32.xlu0 %v1196, 5
    %v1339 = vpop.permute.xlu0 %1338
    %vm1342 = vcmask 39936
    %v1343 = vsel %vm1342, 0.0, %v1337
    %v1344 = vsel %vm1342, 0.0, %v1339
    %1345 = vrot.lane.b32.xlu0 %v1193, 117
    %v1346 = vpop.permute.xlu0 %1345
    %1347 = vrot.lane.b32.xlu0 %v1196, 117
    %v1348 = vpop.permute.xlu0 %1347
    %v1351 = vsel %vm1342, 0.0, %v1346
    %v1352 = vsel %vm1342, 0.0, %v1348
    %1355 = vrot.lane.b32.xlu0 %v1351, 16
    %v1356 = vpop.permute.xlu0 %1355
    %1357 = vrot.lane.b32.xlu0 %v1352, 16
    %v1358 = vpop.permute.xlu0 %1357
    %v1361 = vsel %vm1234, %v1343, %v1356
    %v1362 = vsel %vm1234, %v1344, %v1358
    %1363 = vrot.lane.b32.xlu0 %v1193, 123
    %v1364 = vpop.permute.xlu0 %1363
    %1365 = vrot.lane.b32.xlu0 %v1196, 123
    %v1366 = vpop.permute.xlu0 %1365
    %vm1369 = vcmask 89088
    %v1370 = vsel %vm1369, %v1364, 0.0
    %v1371 = vsel %vm1369, %v1366, 0.0
    %1372 = vrot.lane.b32.xlu0 %v1193, 107
    %v1373 = vpop.permute.xlu0 %1372
    %1374 = vrot.lane.b32.xlu0 %v1196, 107
    %v1375 = vpop.permute.xlu0 %1374
    %v1378 = vsel %vm1369, %v1373, 0.0
    %v1379 = vsel %vm1369, %v1375, 0.0
    %1382 = vrot.lane.b32.xlu0 %v1378, 16
    %v1383 = vpop.permute.xlu0 %1382
    %1384 = vrot.lane.b32.xlu0 %v1379, 16
    %v1385 = vpop.permute.xlu0 %1384
    %v1388 = vsel %vm1234, %v1370, %v1383
    %v1389 = vsel %vm1234, %v1371, %v1385
    %s1390 = sld [smem:[#allocation2 + $0xc]]
    %v1391 = vstv %s1390
    %v1392 = vmul.f32 %v1391, %v1361
    %v1393 = vmul.f32 %v1391, %v1362
    %s1394 = sld [smem:[#allocation2 + $0xd]]
    %v1395 = vstv %s1394
    %v1396 = vmul.f32 %v1395, %v1193
    %v1397 = vmul.f32 %v1395, %v1196
    %v1398 = vadd.f32 %v1392, %v1396
    %v1399 = vadd.f32 %v1393, %v1397
    %s1400 = sld [smem:[#allocation2 + $0xe]]
    %v1401 = vstv %s1400
    %v1402 = vmul.f32 %v1401, %v1388
    %v1403 = vmul.f32 %v1401, %v1389
    %v1404 = vadd.f32 %v1398, %v1402
    %v1405 = vadd.f32 %v1399, %v1403
    %v1406 = vrot.slane %v1404, 3
    %v1407 = vrot.slane %v1405, 3
    %v1408 = vsel %vm1327, %v1406, %v1407
    %v1409 = vsel %vm1327, %v1407, %v1406
    %vm1410 = vcmp.ge.s32.totalorder %v736, 5
    %vm1411 = vcmp.ge.s32.totalorder %v740, 5
    %v1412 = vsel %vm1410, %v1409, 0.0
    %v1413 = vsel %vm1411, %v1408, 0.0
    %v1414 = vadd.f32 %v1334, %v1412
    %v1415 = vadd.f32 %v1335, %v1413
    %s1416 = sld [smem:[#allocation2 + $0xf]]
    %v1417 = vstv %s1416
    %v1418 = vmul.f32 %v1417, %v1361
    %v1419 = vmul.f32 %v1417, %v1362
    %s1420 = sld [smem:[#allocation2 + $0x10]]
    %v1421 = vstv %s1420
    %v1422 = vmul.f32 %v1421, %v1193
    %v1423 = vmul.f32 %v1421, %v1196
    %v1424 = vadd.f32 %v1418, %v1422
    %v1425 = vadd.f32 %v1419, %v1423
    %s1426 = sld [smem:[#allocation2 + $0x11]]
    %v1427 = vstv %s1426
    %v1428 = vmul.f32 %v1427, %v1388
    %v1429 = vmul.f32 %v1427, %v1389
    %v1430 = vadd.f32 %v1424, %v1428
    %v1431 = vadd.f32 %v1425, %v1429
    %v1432 = vadd.f32 %v1414, %v1430
    %v1433 = vadd.f32 %v1415, %v1431
    %s1434 = sld [smem:[#allocation2 + $0x12]]
    %v1435 = vstv %s1434
    %v1436 = vmul.f32 %v1435, %v1361
    %v1437 = vmul.f32 %v1435, %v1362
    %s1438 = sld [smem:[#allocation2 + $0x13]]
    %v1439 = vstv %s1438
    %v1440 = vmul.f32 %v1439, %v1193
    %v1441 = vmul.f32 %v1439, %v1196
    %v1442 = vadd.f32 %v1436, %v1440
    %v1443 = vadd.f32 %v1437, %v1441
    %s1444 = sld [smem:[#allocation2 + $0x14]]
    %v1445 = vstv %s1444
    %v1446 = vmul.f32 %v1445, %v1388
    %v1447 = vmul.f32 %v1445, %v1389
    %v1448 = vadd.f32 %v1442, %v1446
    %v1449 = vadd.f32 %v1443, %v1447
    %v1450 = vrot.slane %v1448, 5
    %v1451 = vrot.slane %v1449, 5
    %v1452 = vsel %vm1282, %v1450, %v1451
    %v1453 = vsel %vm1282, %v1451, %v1450
    %vm1454 = vcmp.lt.s32.totalorder %v736, 11
    %vm1455 = vcmp.lt.s32.totalorder %v740, 11
    %v1456 = vsel %vm1454, %v1452, 0.0
    %v1457 = vsel %vm1455, %v1453, 0.0
    %v1458 = vadd.f32 %v1432, %v1456
    %v1459 = vadd.f32 %v1433, %v1457
    %1460 = vrot.lane.b32.xlu0 %v1193, 7
    %v1461 = vpop.permute.xlu0 %1460
    %1462 = vrot.lane.b32.xlu0 %v1196, 7
    %v1463 = vpop.permute.xlu0 %1462
    %vm1466 = vcmask 56320
    %v1467 = vsel %vm1466, 0.0, %v1461
    %v1468 = vsel %vm1466, 0.0, %v1463
    %1469 = vrot.lane.b32.xlu0 %v1193, 119
    %v1470 = vpop.permute.xlu0 %1469
    %1471 = vrot.lane.b32.xlu0 %v1196, 119
    %v1472 = vpop.permute.xlu0 %1471
    %v1475 = vsel %vm1466, 0.0, %v1470
    %v1476 = vsel %vm1466, 0.0, %v1472
    %1479 = vrot.lane.b32.xlu0 %v1475, 16
    %v1480 = vpop.permute.xlu0 %1479
    %1481 = vrot.lane.b32.xlu0 %v1476, 16
    %v1482 = vpop.permute.xlu0 %1481
    %v1485 = vsel %vm1234, %v1467, %v1480
    %v1486 = vsel %vm1234, %v1468, %v1482
    %1487 = vrot.lane.b32.xlu0 %v1193, 121
    %v1488 = vpop.permute.xlu0 %1487
    %1489 = vrot.lane.b32.xlu0 %v1196, 121
    %v1490 = vpop.permute.xlu0 %1489
    %vm1493 = vcmask 72704
    %v1494 = vsel %vm1493, %v1488, 0.0
    %v1495 = vsel %vm1493, %v1490, 0.0
    %1496 = vrot.lane.b32.xlu0 %v1193, 105
    %v1497 = vpop.permute.xlu0 %1496
    %1498 = vrot.lane.b32.xlu0 %v1196, 105
    %v1499 = vpop.permute.xlu0 %1498
    %v1502 = vsel %vm1493, %v1497, 0.0
    %v1503 = vsel %vm1493, %v1499, 0.0
    %1506 = vrot.lane.b32.xlu0 %v1502, 16
    %v1507 = vpop.permute.xlu0 %1506
    %1508 = vrot.lane.b32.xlu0 %v1503, 16
    %v1509 = vpop.permute.xlu0 %1508
    %v1512 = vsel %vm1234, %v1494, %v1507
    %v1513 = vsel %vm1234, %v1495, %v1509
    %s1514 = sld [smem:[#allocation2 + $0x15]]
    %v1515 = vstv %s1514
    %v1516 = vmul.f32 %v1515, %v1485
    %v1517 = vmul.f32 %v1515, %v1486
    %s1518 = sld [smem:[#allocation2 + $0x16]]
    %v1519 = vstv %s1518
    %v1520 = vmul.f32 %v1519, %v1193
    %v1521 = vmul.f32 %v1519, %v1196
    %v1522 = vadd.f32 %v1516, %v1520
    %v1523 = vadd.f32 %v1517, %v1521
    %s1524 = sld [smem:[#allocation2 + $0x17]]
    %v1525 = vstv %s1524
    %v1526 = vmul.f32 %v1525, %v1512
    %v1527 = vmul.f32 %v1525, %v1513
    %v1528 = vadd.f32 %v1522, %v1526
    %v1529 = vadd.f32 %v1523, %v1527
    %v1530 = vrot.slane %v1528, 1
    %v1531 = vrot.slane %v1529, 1
    %v1532 = vsel %vm884, %v1530, %v1531
    %v1533 = vsel %vm884, %v1531, %v1530
    %vm1534 = vcmp.ge.s32.totalorder %v736, 7
    %vm1535 = vcmp.ge.s32.totalorder %v740, 7
    %v1536 = vsel %vm1534, %v1533, 0.0
    %v1537 = vsel %vm1535, %v1532, 0.0
    %v1538 = vadd.f32 %v1458, %v1536
    %v1539 = vadd.f32 %v1459, %v1537
    %s1540 = sld [smem:[#allocation2 + $0x18]]
    %v1541 = vstv %s1540
    %v1542 = vmul.f32 %v1541, %v1485
    %v1543 = vmul.f32 %v1541, %v1486
    %s1544 = sld [smem:[#allocation2 + $0x19]]
    %v1545 = vstv %s1544
    %v1546 = vmul.f32 %v1545, %v1193
    %v1547 = vmul.f32 %v1545, %v1196
    %v1548 = vadd.f32 %v1542, %v1546
    %v1549 = vadd.f32 %v1543, %v1547
    %s1550 = sld [smem:[#allocation2 + $0x1a]]
    %v1551 = vstv %s1550
    %v1552 = vmul.f32 %v1551, %v1512
    %v1553 = vmul.f32 %v1551, %v1513
    %v1554 = vadd.f32 %v1548, %v1552
    %v1555 = vadd.f32 %v1549, %v1553
    %v1556 = vadd.f32 %v1538, %v1554
    %v1557 = vadd.f32 %v1539, %v1555
    %s1558 = sld [smem:[#allocation2 + $0x1b]]
    %v1559 = vstv %s1558
    %v1560 = vmul.f32 %v1559, %v1485
    %v1561 = vmul.f32 %v1559, %v1486
    %s1562 = sld [smem:[#allocation2 + $0x1c]]
    %v1563 = vstv %s1562
    %v1564 = vmul.f32 %v1563, %v1193
    %v1565 = vmul.f32 %v1563, %v1196
    %v1566 = vadd.f32 %v1560, %v1564
    %v1567 = vadd.f32 %v1561, %v1565
    %s1568 = sld [smem:[#allocation2 + $0x1d]]
    %v1569 = vstv %s1568
    %v1570 = vmul.f32 %v1569, %v1512
    %v1571 = vmul.f32 %v1569, %v1513
    %v1572 = vadd.f32 %v1566, %v1570
    %v1573 = vadd.f32 %v1567, %v1571
    %v1574 = vrot.slane %v1572, 7
    %v1575 = vrot.slane %v1573, 7
    %v1576 = vsel %vm737, %v1574, %v1575
    %v1577 = vsel %vm737, %v1575, %v1574
    %vm1578 = vcmp.lt.s32.totalorder %v736, 9
    %vm1579 = vcmp.lt.s32.totalorder %v740, 9
    %v1580 = vsel %vm1578, %v1576, 0.0
    %v1581 = vsel %vm1579, %v1577, 0.0
    %v1582 = vadd.f32 %v1556, %v1580
    %v1583 = vadd.f32 %v1557, %v1581
    %v1584 = vxor.u32 %v1582, 2147483648
    %v1585 = vxor.u32 %v1583, 2147483648
    %v1586 = vmul.f32 %v1584, 1.442695
    %v1587 = vpow.pop %v1586
    %v1588 = vmul.f32 %v1585, 1.442695
    %v1589 = vpow.pop %v1588
    %v1590 = vadd.f32 %v1587, 1.0
    %v1591 = vadd.f32 %v1589, 1.0
    %v1592 = vrcp.pop %v1590
    %v1593 = vmul.f32 1.0, %v1592
    %v1594 = vrcp.pop %v1591
    %v1595 = vmul.f32 1.0, %v1594
    %v1596 = vpack.c.bf16 %v1595, %v1593
    %v1597 = vld [vmem:[%s5 + $0x288] sm:$0xf]
    %v1598 = vld [vmem:[%s5 + $0x28c] sm:$0xf]
    %v1599 = vld [vmem:[%s5 + $0x290] sm:$0xf]
    %v1600 = vld [vmem:[%s5 + $0x294] sm:$0xf]
    %v1605 = vunpack.c.l.b16 %v1597
    %v1606 = vunpack.c.l.b16 %v1598
    %v1607 = vunpack.c.l.b16 %v1599
    %v1608 = vunpack.c.l.b16 %v1600
    %v1609 = vpack.c.b16 %v1606, %v1605
    %v1610 = vpack.c.b16 %v1608, %v1607
    %v1614 = vsel %vm312, %v1596, 0
    %1616 = vmatprep.subr.bf16.mxu0 0
    %1617 = vmatpush1.bf16.msra.mxu0 %v1609
    %1618 = vmatprep.subr.bf16.mxu0 0
    %1619 = vmatpush1.bf16.msra.mxu0 %v1610
    %1620 = vmatprep.subr.bf16.mxu0 0
    %1621 = vmatpush1.bf16.msra.mxu0 0
    %1622 = vmatprep.subr.bf16.mxu0 0
    %1623 = vmatpush1.bf16.msra.mxu0 0
    %1624 = vmatprep.subr.bf16.mxu0 0
    %1625 = vmatpush1.bf16.msra.mxu0 0
    %1626 = vmatprep.subr.bf16.mxu0 0
    %1627 = vmatpush1.bf16.msra.mxu0 0
    %1628 = vmatprep.subr.bf16.mxu0 0
    %1629 = vmatpush1.bf16.msra.mxu0 0
    %1630 = vmatprep.subr.bf16.mxu0 0
    %1631 = vmatpush1.bf16.msra.mxu0 0
    %1632 = vmatprep.subr.bf16.mxu0 0
    %1633 = vmatpush1.bf16.msra.mxu0 0
    %1634 = vmatprep.subr.bf16.mxu0 0
    %1635 = vmatpush1.bf16.msra.mxu0 0
    %1636 = vmatprep.subr.bf16.mxu0 0
    %1637 = vmatpush1.bf16.msra.mxu0 0
    %1638 = vmatprep.subr.bf16.mxu0 0
    %1639 = vmatpush1.bf16.msra.mxu0 0
    %1640 = vmatprep.subr.bf16.mxu0 0
    %1641 = vmatpush1.bf16.msra.mxu0 0
    %1642 = vmatprep.subr.bf16.mxu0 0
    %1643 = vmatpush1.bf16.msra.mxu0 0
    %1644 = vmatprep.subr.bf16.mxu0 0
    %1645 = vmatpush1.bf16.msra.mxu0 0
    %1646 = vmatprep.subr.bf16.mxu0 0
    %1647 = vmatpush1.bf16.msra.mxu0 0
    %1648 = vmatprep.mubr.bf16.mxu0 0
    %1649 = vmatmul.mubr.bf16.gmra.mrb[0].mxu0 %v1614
    %v1650 = vpop.f32.mrb[0].mxu0
    %v1651 = vadd.f32 0.0, %v1650
    %v1652 = vpop.f32.mrb[0].mxu0
    %v1653 = vpop.f32.mrb[0].mxu0
    %v1654 = vadd.f32 0.0, %v1653
    %v1655 = vpop.f32.mrb[0].mxu0
    %1656 = vdwg.mxu0
    %v1657 = vadd.f32 %v1091, %v1651
    %v1658 = vadd.f32 %v1092, %v1654
    %v1659 = vpack.c.bf16 %v1658, %v1657
    %v1660 = vld [vmem:[%s5 + $0x1b8] sm:$0xf]
    %v1661 = vld [vmem:[%s5 + $0x1bc] sm:$0xf]
    %v1662 = vld [vmem:[%s5 + $0x1c0] sm:$0xf]
    %v1663 = vld [vmem:[%s5 + $0x1c4] sm:$0xf]
    %v1664 = vld [vmem:[%s5 + $0x1c8] sm:$0xf]
    %v1665 = vld [vmem:[%s5 + $0x1cc] sm:$0xf]
    %v1666 = vld [vmem:[%s5 + $0x1d0] sm:$0xf]
    %v1667 = vld [vmem:[%s5 + $0x1d4] sm:$0xf]
    %v1668 = vld [vmem:[%s5 + $0x1d8] sm:$0xf]
    %v1669 = vld [vmem:[%s5 + $0x1dc] sm:$0xf]
    %v1670 = vld [vmem:[%s5 + $0x1e0] sm:$0xf]
    %v1671 = vld [vmem:[%s5 + $0x1e4] sm:$0xf]
    %v1672 = vld [vmem:[%s5 + $0x1e8] sm:$0xf]
    %v1673 = vld [vmem:[%s5 + $0x1ec] sm:$0xf]
    %v1674 = vld [vmem:[%s5 + $0x1f0] sm:$0xf]
    %v1675 = vld [vmem:[%s5 + $0x1f4] sm:$0xf]
    %v1692 = vunpack.c.l.b16 %v1660
    %v1693 = vunpack.c.l.b16 %v1661
    %v1694 = vunpack.c.l.b16 %v1662
    %v1695 = vunpack.c.l.b16 %v1663
    %v1696 = vunpack.c.l.b16 %v1664
    %v1697 = vunpack.c.l.b16 %v1665
    %v1698 = vunpack.c.l.b16 %v1666
    %v1699 = vunpack.c.l.b16 %v1667
    %v1700 = vunpack.c.l.b16 %v1668
    %v1701 = vunpack.c.l.b16 %v1669
    %v1702 = vunpack.c.l.b16 %v1670
    %v1703 = vunpack.c.l.b16 %v1671
    %v1704 = vunpack.c.l.b16 %v1672
    %v1705 = vunpack.c.l.b16 %v1673
    %v1706 = vunpack.c.l.b16 %v1674
    %v1707 = vunpack.c.l.b16 %v1675
    %v1708 = vpack.c.b16 %v1693, %v1692
    %v1709 = vpack.c.b16 %v1695, %v1694
    %v1710 = vpack.c.b16 %v1697, %v1696
    %v1711 = vpack.c.b16 %v1699, %v1698
    %v1712 = vpack.c.b16 %v1701, %v1700
    %v1713 = vpack.c.b16 %v1703, %v1702
    %v1714 = vpack.c.b16 %v1705, %v1704
    %v1715 = vpack.c.b16 %v1707, %v1706
    %1724 = vmatprep.subr.bf16.mxu0 0
    %1725 = vmatpush1.bf16.msra.mxu0 %v1708
    %1726 = vmatprep.subr.bf16.mxu0 0
    %1727 = vmatpush1.bf16.msra.mxu0 %v1709
    %1728 = vmatprep.subr.bf16.mxu0 0
    %1729 = vmatpush1.bf16.msra.mxu0 %v1710
    %1730 = vmatprep.subr.bf16.mxu0 0
    %1731 = vmatpush1.bf16.msra.mxu0 %v1711
    %1732 = vmatprep.subr.bf16.mxu0 0
    %1733 = vmatpush1.bf16.msra.mxu0 %v1712
    %1734 = vmatprep.subr.bf16.mxu0 0
    %1735 = vmatpush1.bf16.msra.mxu0 %v1713
    %1736 = vmatprep.subr.bf16.mxu0 0
    %1737 = vmatpush1.bf16.msra.mxu0 %v1714
    %1738 = vmatprep.subr.bf16.mxu0 0
    %1739 = vmatpush1.bf16.msra.mxu0 %v1715
    %1740 = vmatprep.subr.bf16.mxu0 0
    %1741 = vmatpush1.bf16.msra.mxu0 0
    %1742 = vmatprep.subr.bf16.mxu0 0
    %1743 = vmatpush1.bf16.msra.mxu0 0
    %1744 = vmatprep.subr.bf16.mxu0 0
    %1745 = vmatpush1.bf16.msra.mxu0 0
    %1746 = vmatprep.subr.bf16.mxu0 0
    %1747 = vmatpush1.bf16.msra.mxu0 0
    %1748 = vmatprep.subr.bf16.mxu0 0
    %1749 = vmatpush1.bf16.msra.mxu0 0
    %1750 = vmatprep.subr.bf16.mxu0 0
    %1751 = vmatpush1.bf16.msra.mxu0 0
    %1752 = vmatprep.subr.bf16.mxu0 0
    %1753 = vmatpush1.bf16.msra.mxu0 0
    %1754 = vmatprep.subr.bf16.mxu0 0
    %1755 = vmatpush1.bf16.msra.mxu0 0
    %1756 = vmatprep.mubr.bf16.mxu0 0
    %1757 = vmatmul.mubr.bf16.gmra.mrb[0].mxu0 %v1659
    %v1758 = vpop.f32.mrb[0].mxu0
    %v1759 = vadd.f32 0.0, %v1758
    %v1760 = vpop.f32.mrb[0].mxu0
    %v1761 = vpop.f32.mrb[0].mxu0
    %v1762 = vadd.f32 0.0, %v1761
    %v1763 = vpop.f32.mrb[0].mxu0
    %1764 = vdwg.mxu0
    %v1765 = vld [vmem:[%s5 + $0x1f8] sm:$0xf]
    %v1766 = vld [vmem:[%s5 + $0x1fc] sm:$0xf]
    %v1767 = vld [vmem:[%s5 + $0x200] sm:$0xf]
    %v1768 = vld [vmem:[%s5 + $0x204] sm:$0xf]
    %v1769 = vld [vmem:[%s5 + $0x208] sm:$0xf]
    %v1770 = vld [vmem:[%s5 + $0x20c] sm:$0xf]
    %v1771 = vld [vmem:[%s5 + $0x210] sm:$0xf]
    %v1772 = vld [vmem:[%s5 + $0x214] sm:$0xf]
    %v1773 = vld [vmem:[%s5 + $0x218] sm:$0xf]
    %v1774 = vld [vmem:[%s5 + $0x21c] sm:$0xf]
    %v1775 = vld [vmem:[%s5 + $0x220] sm:$0xf]
    %v1776 = vld [vmem:[%s5 + $0x224] sm:$0xf]
    %v1777 = vld [vmem:[%s5 + $0x228] sm:$0xf]
    %v1778 = vld [vmem:[%s5 + $0x22c] sm:$0xf]
    %v1779 = vld [vmem:[%s5 + $0x230] sm:$0xf]
    %v1780 = vld [vmem:[%s5 + $0x234] sm:$0xf]
    %v1781 = vld [vmem:[%s5 + $0x238] sm:$0xf]
    %v1782 = vld [vmem:[%s5 + $0x23c] sm:$0xf]
    %v1783 = vld [vmem:[%s5 + $0x240] sm:$0xf]
    %v1784 = vld [vmem:[%s5 + $0x244] sm:$0xf]
    %v1785 = vld [vmem:[%s5 + $0x248] sm:$0xf]
    %v1786 = vld [vmem:[%s5 + $0x24c] sm:$0xf]
    %v1787 = vld [vmem:[%s5 + $0x250] sm:$0xf]
    %v1788 = vld [vmem:[%s5 + $0x254] sm:$0xf]
    %v1789 = vld [vmem:[%s5 + $0x258] sm:$0xf]
    %v1790 = vld [vmem:[%s5 + $0x25c] sm:$0xf]
    %v1791 = vld [vmem:[%s5 + $0x260] sm:$0xf]
    %v1792 = vld [vmem:[%s5 + $0x264] sm:$0xf]
    %v1793 = vld [vmem:[%s5 + $0x268] sm:$0xf]
    %v1794 = vld [vmem:[%s5 + $0x26c] sm:$0xf]
    %v1795 = vld [vmem:[%s5 + $0x270] sm:$0xf]
    %v1796 = vld [vmem:[%s5 + $0x274] sm:$0xf]
    %v1813 = vunpack.c.l.b16 %v1781
    %v1814 = vunpack.c.l.b16 %v1782
    %v1815 = vunpack.c.l.b16 %v1783
    %v1816 = vunpack.c.l.b16 %v1784
    %v1817 = vunpack.c.l.b16 %v1785
    %v1818 = vunpack.c.l.b16 %v1786
    %v1819 = vunpack.c.l.b16 %v1787
    %v1820 = vunpack.c.l.b16 %v1788
    %v1821 = vunpack.c.l.b16 %v1789
    %v1822 = vunpack.c.l.b16 %v1790
    %v1823 = vunpack.c.l.b16 %v1791
    %v1824 = vunpack.c.l.b16 %v1792
    %v1825 = vunpack.c.l.b16 %v1793
    %v1826 = vunpack.c.l.b16 %v1794
    %v1827 = vunpack.c.l.b16 %v1795
    %v1828 = vunpack.c.l.b16 %v1796
    %v1829 = vpack.c.b16 %v1814, %v1813
    %v1830 = vpack.c.b16 %v1816, %v1815
    %v1831 = vpack.c.b16 %v1818, %v1817
    %v1832 = vpack.c.b16 %v1820, %v1819
    %v1833 = vpack.c.b16 %v1822, %v1821
    %v1834 = vpack.c.b16 %v1824, %v1823
    %v1835 = vpack.c.b16 %v1826, %v1825
    %v1836 = vpack.c.b16 %v1828, %v1827
    %1845 = vmatprep.subr.bf16.mxu0 0
    %1846 = vmatpush1.bf16.msra.mxu0 %v1829
    %1847 = vmatprep.subr.bf16.mxu0 0
    %1848 = vmatpush1.bf16.msra.mxu0 %v1830
    %1849 = vmatprep.subr.bf16.mxu0 0
    %1850 = vmatpush1.bf16.msra.mxu0 %v1831
    %1851 = vmatprep.subr.bf16.mxu0 0
    %1852 = vmatpush1.bf16.msra.mxu0 %v1832
    %1853 = vmatprep.subr.bf16.mxu0 0
    %1854 = vmatpush1.bf16.msra.mxu0 %v1833
    %1855 = vmatprep.subr.bf16.mxu0 0
    %1856 = vmatpush1.bf16.msra.mxu0 %v1834
    %1857 = vmatprep.subr.bf16.mxu0 0
    %1858 = vmatpush1.bf16.msra.mxu0 %v1835
    %1859 = vmatprep.subr.bf16.mxu0 0
    %1860 = vmatpush1.bf16.msra.mxu0 %v1836
    %1861 = vmatprep.subr.bf16.mxu0 0
    %1862 = vmatpush1.bf16.msra.mxu0 0
    %1863 = vmatprep.subr.bf16.mxu0 0
    %1864 = vmatpush1.bf16.msra.mxu0 0
    %1865 = vmatprep.subr.bf16.mxu0 0
    %1866 = vmatpush1.bf16.msra.mxu0 0
    %1867 = vmatprep.subr.bf16.mxu0 0
    %1868 = vmatpush1.bf16.msra.mxu0 0
    %1869 = vmatprep.subr.bf16.mxu0 0
    %1870 = vmatpush1.bf16.msra.mxu0 0
    %1871 = vmatprep.subr.bf16.mxu0 0
    %1872 = vmatpush1.bf16.msra.mxu0 0
    %1873 = vmatprep.subr.bf16.mxu0 0
    %1874 = vmatpush1.bf16.msra.mxu0 0
    %1875 = vmatprep.subr.bf16.mxu0 0
    %1876 = vmatpush1.bf16.msra.mxu0 0
    %1877 = vmatprep.mubr.bf16.mxu0 0
    %1878 = vmatmul.mubr.bf16.gmra.mrb[0].mxu0 %v1659
    %v1879 = vpop.f32.mrb[0].mxu0
    %v1880 = vadd.f32 0.0, %v1879
    %v1881 = vpop.f32.mrb[0].mxu0
    %v1882 = vpop.f32.mrb[0].mxu0
    %v1883 = vadd.f32 0.0, %v1882
    %v1884 = vpop.f32.mrb[0].mxu0
    %1885 = vdwg.mxu0
    %v1886 = vrot.slane %v1759, 7
    %v1887 = vrot.slane %v1762, 7
    %v1888 = vsel %vm737, %v1886, %v1887
    %v1889 = vsel %vm737, %v1887, %v1886
    %v1890 = vsel %vm741, %v1889, 0.0
    %v1891 = vsel %vm742, %v1888, 0.0
    %v1908 = vunpack.c.l.b16 %v1765
    %v1909 = vunpack.c.l.b16 %v1766
    %v1910 = vunpack.c.l.b16 %v1767
    %v1911 = vunpack.c.l.b16 %v1768
    %v1912 = vunpack.c.l.b16 %v1769
    %v1913 = vunpack.c.l.b16 %v1770
    %v1914 = vunpack.c.l.b16 %v1771
    %v1915 = vunpack.c.l.b16 %v1772
    %v1916 = vunpack.c.l.b16 %v1773
    %v1917 = vunpack.c.l.b16 %v1774
    %v1918 = vunpack.c.l.b16 %v1775
    %v1919 = vunpack.c.l.b16 %v1776
    %v1920 = vunpack.c.l.b16 %v1777
    %v1921 = vunpack.c.l.b16 %v1778
    %v1922 = vunpack.c.l.b16 %v1779
    %v1923 = vunpack.c.l.b16 %v1780
    %v1924 = vpack.c.b16 %v1909, %v1908
    %v1925 = vpack.c.b16 %v1911, %v1910
    %v1926 = vpack.c.b16 %v1913, %v1912
    %v1927 = vpack.c.b16 %v1915, %v1914
    %v1928 = vpack.c.b16 %v1917, %v1916
    %v1929 = vpack.c.b16 %v1919, %v1918
    %v1930 = vpack.c.b16 %v1921, %v1920
    %v1931 = vpack.c.b16 %v1923, %v1922
    %1940 = vmatprep.subr.bf16.mxu0 0
    %1941 = vmatpush1.bf16.msra.mxu0 %v1924
    %1942 = vmatprep.subr.bf16.mxu0 0
    %1943 = vmatpush1.bf16.msra.mxu0 %v1925
    %1944 = vmatprep.subr.bf16.mxu0 0
    %1945 = vmatpush1.bf16.msra.mxu0 %v1926
    %1946 = vmatprep.subr.bf16.mxu0 0
    %1947 = vmatpush1.bf16.msra.mxu0 %v1927
    %1948 = vmatprep.subr.bf16.mxu0 0
    %1949 = vmatpush1.bf16.msra.mxu0 %v1928
    %1950 = vmatprep.subr.bf16.mxu0 0
    %1951 = vmatpush1.bf16.msra.mxu0 %v1929
    %1952 = vmatprep.subr.bf16.mxu0 0
    %1953 = vmatpush1.bf16.msra.mxu0 %v1930
    %1954 = vmatprep.subr.bf16.mxu0 0
    %1955 = vmatpush1.bf16.msra.mxu0 %v1931
    %1956 = vmatprep.subr.bf16.mxu0 0
    %1957 = vmatpush1.bf16.msra.mxu0 0
    %1958 = vmatprep.subr.bf16.mxu0 0
    %1959 = vmatpush1.bf16.msra.mxu0 0
    %1960 = vmatprep.subr.bf16.mxu0 0
    %1961 = vmatpush1.bf16.msra.mxu0 0
    %1962 = vmatprep.subr.bf16.mxu0 0
    %1963 = vmatpush1.bf16.msra.mxu0 0
    %1964 = vmatprep.subr.bf16.mxu0 0
    %1965 = vmatpush1.bf16.msra.mxu0 0
    %1966 = vmatprep.subr.bf16.mxu0 0
    %1967 = vmatpush1.bf16.msra.mxu0 0
    %1968 = vmatprep.subr.bf16.mxu0 0
    %1969 = vmatpush1.bf16.msra.mxu0 0
    %1970 = vmatprep.subr.bf16.mxu0 0
    %1971 = vmatpush1.bf16.msra.mxu0 0
    %1972 = vmatprep.mubr.bf16.mxu0 0
    %1973 = vmatmul.mubr.bf16.gmra.mrb[0].mxu0 %v1659
    %v1974 = vpop.f32.mrb[0].mxu0
    %v1975 = vadd.f32 %v1890, %v1974
    %v1976 = vpop.f32.mrb[0].mxu0
    %v1977 = vpop.f32.mrb[0].mxu0
    %v1978 = vadd.f32 %v1891, %v1977
    %v1979 = vpop.f32.mrb[0].mxu0
    %1980 = vdwg.mxu0
    %v1981 = vrot.slane %v1880, 1
    %v1982 = vrot.slane %v1883, 1
    %v1983 = vsel %vm884, %v1981, %v1982
    %v1984 = vsel %vm884, %v1982, %v1981
    %v1985 = vsel %vm887, %v1983, 0.0
    %v1986 = vsel %vm888, %v1984, 0.0
    %v1987 = vadd.f32 %v1975, %v1985
    %v1988 = vadd.f32 %v1978, %v1986
    %v1989 = vld [vmem:[%s5 + $0x4] sm:$0x1]
    %v1990 = vunpack.c.l.bf16 %v1989
    %v1991 = vlaneseq
    %v1992 = vshrl.u32 %v1991, 7
    %v1993 = vsub.s32 0, %v1992
    %v1994 = vrot.slane %v1990, %v1993
    %v1995 = vadd.f32 %v1987, %v1994
    %v1996 = vadd.f32 %v1988, %v1994
    %v1997 = vmax.f32 %v1995, 0.0
    %v1998 = vmax.f32 %v1996, 0.0
    %1999 = vst [vmem:[%s7] sm:$0xff] %v1997
    %2000 = vst [vmem:[%s7 + $0x8] sm:$0xff] %v1998
    // Predicated region
    $region34: #{upsample_block_forward.1} parent=1 // pred_check
      _
    $region35: #{upsample_block_forward.1} parent=1 // pred_check_branch
      %2002 = sbr.rel (0) target = $region37
    $region36: #{upsample_block_forward.1} parent=1 // pred_region
      _
    $region37: #{upsample_block_forward.1} parent=1 // pred_fallthru
      _
    // Predicated region
    $region38: #{upsample_block_forward.1} parent=1 // pred_check
      _
    $region39: #{upsample_block_forward.1} parent=1 // pred_check_branch
      %2004 = sbr.rel (0) target = $region41
    $region40: #{upsample_block_forward.1} parent=1 // pred_region
      _
    $region41: #{upsample_block_forward.1} parent=1 // pred_fallthru
      _
    %2005 = vsyncpa [#allocation3], 1

</llo_original>
